<compile_context>
chip_gen: v7x
topology: tpu7x:2x2x1
jax: 0.10.0
libtpu: 0.0.40
codegen_flags: <defaults>
</compile_context>

<pallas_src>
import functools

import jax
import jax.numpy as jnp
from jax.experimental import pallas as pl
from jax.experimental.pallas import tpu as pltpu


# ----------------------------------------------------------------------------
# Kernel
# ----------------------------------------------------------------------------
def _discriminator_kernel(buggy_ref, patch_ref,
                          w1a_ref, w1b_ref, b1_ref, gamma_ref, beta_ref,
                          w2_ref, b2_ref,
                          out_ref,
                          bsum_ref, psum_ref,
                          *, inv_seq_len):
    """Grid = (batch_tiles, seq_tiles); seq is the reduction ('arbitrary') axis."""
    l = pl.program_id(1)

    # ---- init accumulators at the first sequence tile of this batch tile ----
    @pl.when(l == 0)
    def _():
        bsum_ref[...] = jnp.zeros_like(bsum_ref)
        psum_ref[...] = jnp.zeros_like(psum_ref)

    # ---- accumulate f32 sums over the sequence tile (mean scaled once later) ----
    bsum_ref[...] += jnp.sum(buggy_ref[...].astype(jnp.float32), axis=1)   # (TB, H)
    psum_ref[...] += jnp.sum(patch_ref[...].astype(jnp.float32), axis=1)   # (TB, H)

    # ---- finalize: MLP head, only on the last sequence tile ----
    @pl.when(l == pl.num_programs(1) - 1)
    def _():
        bmean = bsum_ref[...] * inv_seq_len                                 # (TB, H) f32
        pmean = psum_ref[...] * inv_seq_len                                 # (TB, H) f32

        # Dropout(0.1) -> identity in eval mode.

        # Split-weight matmul == concat([bmean, pmean]) @ w1, without the
        # lane-axis concatenate.  Full f32 (exact parity with the PyTorch
        # reference); these dots run once per batch tile so precision is free.
        h = (jnp.dot(bmean, w1a_ref[...], preferred_element_type=jnp.float32)
             + jnp.dot(pmean, w1b_ref[...], preferred_element_type=jnp.float32)
             + b1_ref[...])                                                 # (TB, H)

        # LayerNorm(H), eps = 1e-5 (PyTorch default), f32.
        mu = jnp.mean(h, axis=-1, keepdims=True)
        var = jnp.mean((h - mu) * (h - mu), axis=-1, keepdims=True)
        h = (h - mu) * jax.lax.rsqrt(var + 1e-5)
        h = h * gamma_ref[...] + beta_ref[...]

        # ReLU; Dropout(0.1) -> identity in eval mode.
        h = jnp.maximum(h, 0.0)

        # Linear(H -> output_dim), f32.
        out = jnp.dot(h, w2_ref[...], preferred_element_type=jnp.float32) + b2_ref[...]
        out_ref[...] = out.astype(out_ref.dtype)


# ----------------------------------------------------------------------------
# VMEM-budget-driven tiling
# ----------------------------------------------------------------------------
def _vmem_capacity_bytes():
    try:
        return int(pltpu.get_tpu_info().vmem_capacity_bytes)
    except Exception:
        return 64 << 20  # conservative (v7x per-TensorCore VMEM)


def _pick_tb(B):
    """Small batch tile; prefer >=2 batch tiles so the v7x megacore engages.
    Only multiple-of-8 tiles (or the full batch) keep the output BlockSpec
    sublane-legal."""
    for d in (8, 16, 32, 64):
        if B % d == 0 and B // d >= 2:
            return d
    for d in (8, 16, 32, 64, 128, 256):
        if B % d == 0:
            return d
    return B


def _pick_tl(L, TB, H, itemsize, stream_budget, n_buf):
    """Largest multiple-of-8 divisor of L (or L itself) such that the streamed
    inputs (2 tensors x n_buf buffers) fit within stream_budget."""
    cands = sorted({d for d in range(8, L + 1, 8) if L % d == 0} | {L}, reverse=True)
    per_tl = 2 * n_buf * TB * H * itemsize
    for tl in cands:
        if tl * per_tl <= stream_budget:
            return tl
    return cands[-1]  # smallest legal tile (degenerate: budget too small)


# ----------------------------------------------------------------------------
# Wrapper
# ----------------------------------------------------------------------------
def discriminator_share_forward(buggy_embedded, patch_embedded,
                                buggy_mask, patch_mask, params):
    """params: w1 (2H,H) f32, b1 (1,H), gamma (1,H), beta (1,H),
       w2 (H,out) f32, b2 (1,out).  Masks are unused (as in the PyTorch module)."""
    del buggy_mask, patch_mask  # not used in the reference forward pass

    B, L, H = buggy_embedded.shape
    out_dim = params["w2"].shape[1]
    itemsize = jnp.dtype(buggy_embedded.dtype).itemsize

    # ---- per-generation VMEM budget -------------------------------------
    vmem_cap = _vmem_capacity_bytes()
    # ~48 MiB on v7x (64 MiB physical), ~96 MiB on v5e/v6e (128 MiB physical).
    vmem_limit = min(int(vmem_cap * 3 // 4), 100 << 20)

    # Resident parameters, counted conservatively as double-buffered (the
    # Buffered(1) request below removes half of this when supported).
    param_bytes = (2 * H * H + H * out_dim + 3 * H + out_dim) * 4
    resident_bytes = 2 * param_bytes

    stream_budget = max(int((vmem_limit - resident_bytes) * 0.70), 1 << 20)

    # ---- tile selection: small TB, TL as large as the budget allows -----
    TB = _pick_tb(B)
    TL = _pick_tl(L, TB, H, itemsize, stream_budget, n_buf=2)

    # If tiles ended up small and there are enough seq steps, add a third
    # buffer on the streamed inputs to hide DMA issue latency.
    n_buf_in = 2
    input_tile_bytes = TB * TL * H * itemsize
    if (input_tile_bytes <= (2 << 20) and L // TL >= 4
            and 2 * 3 * input_tile_bytes <= stream_budget):
        n_buf_in = 3

    # Make sure the limit actually covers what we picked (degenerate shapes).
    needed = (2 * n_buf_in * TB * TL * H * itemsize + resident_bytes
              + 2 * 2 * TB * max(H, 128) * 4        # f32 sum accumulators (padded)
              + 2 * TB * 128 * 4)                   # output block (padded lanes)
    vmem_limit = int(max(vmem_limit, min(int(needed * 1.2), vmem_cap * 95 // 100)))

    grid = (B // TB, L // TL)

    # ---- parameters ------------------------------------------------------
    w1a = params["w1"][:H]          # (H, H) f32
    w1b = params["w1"][H:]          # (H, H) f32
    args = (buggy_embedded, patch_embedded,
            w1a, w1b, params["b1"], params["gamma"], params["beta"],
            params["w2"], params["b2"])

    kernel = functools.partial(_discriminator_kernel, inv_seq_len=1.0 / float(L))

    # ---- pallas_call builder (tuned pipeline_modes, with plain fallback) --
    def build(tuned):
        emb_kw = ({"pipeline_mode": pl.Buffered(n_buf_in)}
                  if (tuned and n_buf_in != 2) else {})
        const_kw = {"pipeline_mode": pl.Buffered(1)} if tuned else {}

        def emb_spec():
            return pl.BlockSpec((TB, TL, H), lambda i, l: (i, l, 0), **emb_kw)

        def const_spec(shape):
            return pl.BlockSpec(shape, lambda i, l, _s=shape: (0,) * len(_s),
                                **const_kw)

        return pl.pallas_call(
            kernel,
            out_shape=jax.ShapeDtypeStruct((B, out_dim), jnp.float32),
            grid_spec=pltpu.PrefetchScalarGridSpec(
                num_scalar_prefetch=0,
                grid=grid,
                in_specs=[
                    emb_spec(),                       # buggy_embedded (B, L, H)
                    emb_spec(),                       # patch_embedded (B, L, H)
                    const_spec((H, H)),               # w1 top half
                    const_spec((H, H)),               # w1 bottom half
                    const_spec((1, H)),               # b1
                    const_spec((1, H)),               # gamma
                    const_spec((1, H)),               # beta
                    const_spec((H, out_dim)),         # w2
                    const_spec((1, out_dim)),         # b2
                ],
                out_specs=pl.BlockSpec((TB, out_dim), lambda i, l: (i, 0)),
                scratch_shapes=[pltpu.VMEM((TB, H), jnp.float32),
                                pltpu.VMEM((TB, H), jnp.float32)],
            ),
            compiler_params=pltpu.CompilerParams(
                dimension_semantics=("parallel", "arbitrary"),
                vmem_limit_bytes=vmem_limit,
            ),
        )

    try:
        return build(tuned=True)(*args)
    except Exception:
        # Fall back to default double-buffered BlockSpecs if this jax/mosaic
        # version rejects the pipeline_mode configuration.
        return build(tuned=False)(*args)


# ----------------------------------------------------------------------------
# Parameter init (matches nn.Linear / nn.LayerNorm defaults, (in,out) layout)
# ----------------------------------------------------------------------------
def init_params(key, hidden_dim, output_dim=2):
    k1, k2, k3, k4 = jax.random.split(key, 4)
    lim1 = 1.0 / jnp.sqrt(2.0 * hidden_dim)
    lim2 = 1.0 / jnp.sqrt(float(hidden_dim))
    return {
        "w1": jax.random.uniform(k1, (2 * hidden_dim, hidden_dim),
                                 jnp.float32, -lim1, lim1),
        "b1": jax.random.uniform(k2, (1, hidden_dim), jnp.float32, -lim1, lim1),
        "gamma": jnp.ones((1, hidden_dim), jnp.float32),
        "beta": jnp.zeros((1, hidden_dim), jnp.float32),
        "w2": jax.random.uniform(k3, (hidden_dim, output_dim),
                                 jnp.float32, -lim2, lim2),
        "b2": jax.random.uniform(k4, (1, output_dim), jnp.float32, -lim2, lim2),
    }


if __name__ == "__main__":
    key = jax.random.PRNGKey(0)
    k_b, k_p, k_params = jax.random.split(key, 3)

    batch, seq, hidden_dim, output_dim = 2, 8, 32, 2

    buggy_embedded = jax.random.normal(k_b, (batch, seq, hidden_dim), jnp.float32)
    patch_embedded = jax.random.normal(k_p, (batch, seq, hidden_dim), jnp.float32)
    buggy_mask = jnp.ones((batch, seq), jnp.float32)   # unused by forward
    patch_mask = jnp.ones((batch, seq), jnp.float32)   # unused by forward

    params = init_params(k_params, hidden_dim, output_dim)

    out = discriminator_share_forward(buggy_embedded, patch_embedded,
                                      buggy_mask, patch_mask, params)
    jax.block_until_ready(out)

    # Pure-JAX f32 reference (exactly the PyTorch forward, eval-mode dropout).
    bm = buggy_embedded.astype(jnp.float32).mean(axis=1)
    pm = patch_embedded.astype(jnp.float32).mean(axis=1)
    combined = jnp.concatenate([bm, pm], axis=1)
    h = combined @ params["w1"] + params["b1"]
    mu = h.mean(-1, keepdims=True)
    var = ((h - mu) ** 2).mean(-1, keepdims=True)
    h = (h - mu) * jax.lax.rsqrt(var + 1e-5)
    h = h * params["gamma"] + params["beta"]
    h = jnp.maximum(h, 0.0)
    ref = h @ params["w2"] + params["b2"]

    assert out.shape == (batch, output_dim)
    assert jnp.allclose(out, ref, atol=1e-2, rtol=1e-2), (out, ref)

    print("KERNEL_OK")
</pallas_src>

<mosaic_0001>
module attributes {stable_mosaic.version = 11 : i64} {
  func.func @_discriminator_kernel(%arg0: i32, %arg1: i32, %arg2: memref<2x8x32xf32, #tpu.memory_space<vmem>>, %arg3: memref<2x8x32xf32, #tpu.memory_space<vmem>>, %arg4: memref<32x32xf32, #tpu.memory_space<vmem>>, %arg5: memref<32x32xf32, #tpu.memory_space<vmem>>, %arg6: memref<1x32xf32, #tpu.memory_space<vmem>>, %arg7: memref<1x32xf32, #tpu.memory_space<vmem>>, %arg8: memref<1x32xf32, #tpu.memory_space<vmem>>, %arg9: memref<32x2xf32, #tpu.memory_space<vmem>>, %arg10: memref<1x2xf32, #tpu.memory_space<vmem>>, %arg11: memref<2x2xf32, #tpu.memory_space<vmem>>, %arg12: memref<2x32xf32, #tpu.memory_space<vmem>>, %arg13: memref<2x32xf32, #tpu.memory_space<vmem>>) attributes {dimension_semantics = [#tpu.dimension_semantics<parallel>, #tpu.dimension_semantics<arbitrary>], iteration_bounds = array<i64: 1, 1>, scalar_prefetch = 0 : i64, scratch_operands = 2 : i64, tpu.core_type = #tpu.core_type<tc>, window_params = [{transform_indices = @transform_0, window_bounds = array<i64: 2, 8, 32>}, {transform_indices = @transform_1, window_bounds = array<i64: 2, 8, 32>}, {pipeline_mode = #tpu.pipeline_mode<synchronous>, transform_indices = @transform_2, window_bounds = array<i64: 32, 32>}, {pipeline_mode = #tpu.pipeline_mode<synchronous>, transform_indices = @transform_3, window_bounds = array<i64: 32, 32>}, {pipeline_mode = #tpu.pipeline_mode<synchronous>, transform_indices = @transform_4, window_bounds = array<i64: 1, 32>}, {pipeline_mode = #tpu.pipeline_mode<synchronous>, transform_indices = @transform_5, window_bounds = array<i64: 1, 32>}, {pipeline_mode = #tpu.pipeline_mode<synchronous>, transform_indices = @transform_6, window_bounds = array<i64: 1, 32>}, {pipeline_mode = #tpu.pipeline_mode<synchronous>, transform_indices = @transform_7, window_bounds = array<i64: 32, 2>}, {pipeline_mode = #tpu.pipeline_mode<synchronous>, transform_indices = @transform_8, window_bounds = array<i64: 1, 2>}, {transform_indices = @transform_9, window_bounds = array<i64: 2, 2>}]} {
    %c0_i32 = arith.constant 0 : i32
    %0 = arith.cmpi eq, %arg1, %c0_i32 : i32
    %1 = arith.extui %0 : i1 to i32
    %c0_i32_0 = arith.constant 0 : i32
    %2 = arith.cmpi ne, %1, %c0_i32_0 : i32
    scf.if %2 {
      %cst_17 = arith.constant 0.000000e+00 : f32
      %16 = vector.broadcast %cst_17 : f32 to vector<2x32xf32>
      %c0_18 = arith.constant 0 : index
      %c0_19 = arith.constant 0 : index
      %17 = vector.load %arg12[%c0_18, %c0_19] : memref<2x32xf32, #tpu.memory_space<vmem>>, vector<2x32xf32>
      tpu.vector_store %arg12[%c0_18, %c0_19], %16 {strides = array<i32>} : memref<2x32xf32, #tpu.memory_space<vmem>>, vector<2x32xf32>,
      %cst_20 = arith.constant 0.000000e+00 : f32
      %18 = vector.broadcast %cst_20 : f32 to vector<2x32xf32>
      %c0_21 = arith.constant 0 : index
      %c0_22 = arith.constant 0 : index
      %19 = vector.load %arg13[%c0_21, %c0_22] : memref<2x32xf32, #tpu.memory_space<vmem>>, vector<2x32xf32>
      tpu.vector_store %arg13[%c0_21, %c0_22], %18 {strides = array<i32>} : memref<2x32xf32, #tpu.memory_space<vmem>>, vector<2x32xf32>,
    } else {
    }
    %c0 = arith.constant 0 : index
    %c0_1 = arith.constant 0 : index
    %3 = vector.load %arg12[%c0, %c0_1] : memref<2x32xf32, #tpu.memory_space<vmem>>, vector<2x32xf32>
    %c0_2 = arith.constant 0 : index
    %c0_3 = arith.constant 0 : index
    %c0_4 = arith.constant 0 : index
    %4 = vector.load %arg2[%c0_2, %c0_3, %c0_4] : memref<2x8x32xf32, #tpu.memory_space<vmem>>, vector<2x8x32xf32>
    %cst = arith.constant dense<0.000000e+00> : vector<2x32xf32>
    %5 = vector.multi_reduction <add>, %4, %cst [1] : vector<2x8x32xf32> to vector<2x32xf32>
    %6 = arith.addf %3, %5 : vector<2x32xf32>
    %c0_5 = arith.constant 0 : index
    %c0_6 = arith.constant 0 : index
    %7 = vector.load %arg12[%c0_5, %c0_6] : memref<2x32xf32, #tpu.memory_space<vmem>>, vector<2x32xf32>
    tpu.vector_store %arg12[%c0_5, %c0_6], %6 {strides = array<i32>} : memref<2x32xf32, #tpu.memory_space<vmem>>, vector<2x32xf32>,
    %c0_7 = arith.constant 0 : index
    %c0_8 = arith.constant 0 : index
    %8 = vector.load %arg13[%c0_7, %c0_8] : memref<2x32xf32, #tpu.memory_space<vmem>>, vector<2x32xf32>
    %c0_9 = arith.constant 0 : index
    %c0_10 = arith.constant 0 : index
    %c0_11 = arith.constant 0 : index
    %9 = vector.load %arg3[%c0_9, %c0_10, %c0_11] : memref<2x8x32xf32, #tpu.memory_space<vmem>>, vector<2x8x32xf32>
    %cst_12 = arith.constant dense<0.000000e+00> : vector<2x32xf32>
    %10 = vector.multi_reduction <add>, %9, %cst_12 [1] : vector<2x8x32xf32> to vector<2x32xf32>
    %11 = arith.addf %8, %10 : vector<2x32xf32>
    %c0_13 = arith.constant 0 : index
    %c0_14 = arith.constant 0 : index
    %12 = vector.load %arg13[%c0_13, %c0_14] : memref<2x32xf32, #tpu.memory_space<vmem>>, vector<2x32xf32>
    tpu.vector_store %arg13[%c0_13, %c0_14], %11 {strides = array<i32>} : memref<2x32xf32, #tpu.memory_space<vmem>>, vector<2x32xf32>,
    %c0_i32_15 = arith.constant 0 : i32
    %13 = arith.cmpi eq, %arg1, %c0_i32_15 : i32
    %14 = arith.extui %13 : i1 to i32
    %c0_i32_16 = arith.constant 0 : i32
    %15 = arith.cmpi ne, %14, %c0_i32_16 : i32
    scf.if %15 {
      %c0_17 = arith.constant 0 : index
      %c0_18 = arith.constant 0 : index
      %16 = vector.load %arg12[%c0_17, %c0_18] : memref<2x32xf32, #tpu.memory_space<vmem>>, vector<2x32xf32>
      %cst_19 = arith.constant 1.250000e-01 : f32
      %17 = vector.broadcast %cst_19 : f32 to vector<2x32xf32>
      %18 = arith.mulf %16, %17 : vector<2x32xf32>
      %c0_20 = arith.constant 0 : index
      %c0_21 = arith.constant 0 : index
      %19 = vector.load %arg13[%c0_20, %c0_21] : memref<2x32xf32, #tpu.memory_space<vmem>>, vector<2x32xf32>
      %cst_22 = arith.constant 1.250000e-01 : f32
      %20 = vector.broadcast %cst_22 : f32 to vector<2x32xf32>
      %21 = arith.mulf %19, %20 : vector<2x32xf32>
      %c0_23 = arith.constant 0 : index
      %c0_24 = arith.constant 0 : index
      %22 = vector.load %arg4[%c0_23, %c0_24] : memref<32x32xf32, #tpu.memory_space<vmem>>, vector<32x32xf32>
      %cst_25 = arith.constant dense<0.000000e+00> : vector<2x32xf32>
      %23 = tpu.matmul %18, %22, %cst_25 {dimension_numbers = #tpu.dot_dimension_numbers<[1], [0], [0], [1], [0, 0, 1, 1], [], []>} : vector<2x32xf32>, vector<32x32xf32>, vector<2x32xf32> -> vector<2x32xf32>
      %c0_26 = arith.constant 0 : index
      %c0_27 = arith.constant 0 : index
      %24 = vector.load %arg5[%c0_26, %c0_27] : memref<32x32xf32, #tpu.memory_space<vmem>>, vector<32x32xf32>
      %cst_28 = arith.constant dense<0.000000e+00> : vector<2x32xf32>
      %25 = tpu.matmul %21, %24, %cst_28 {dimension_numbers = #tpu.dot_dimension_numbers<[1], [0], [0], [1], [0, 0, 1, 1], [], []>} : vector<2x32xf32>, vector<32x32xf32>, vector<2x32xf32> -> vector<2x32xf32>
      %26 = arith.addf %23, %25 : vector<2x32xf32>
      %c0_29 = arith.constant 0 : index
      %c0_30 = arith.constant 0 : index
      %27 = vector.load %arg6[%c0_29, %c0_30] : memref<1x32xf32, #tpu.memory_space<vmem>>, vector<1x32xf32>
      %28 = vector.broadcast %27 : vector<1x32xf32> to vector<2x32xf32>
      %29 = arith.addf %26, %28 : vector<2x32xf32>
      %cst_31 = arith.constant dense<0.000000e+00> : vector<2xf32>
      %30 = vector.multi_reduction <add>, %29, %cst_31 [1] : vector<2x32xf32> to vector<2xf32>
      %31 = vector.shape_cast %30 : vector<2xf32> to vector<2x1xf32>
      %cst_32 = arith.constant 3.200000e+01 : f32
      %32 = vector.broadcast %cst_32 : f32 to vector<2x1xf32>
      %33 = arith.divf %31, %32 : vector<2x1xf32>
      %34 = vector.broadcast %33 : vector<2x1xf32> to vector<2x32xf32>
      %35 = arith.subf %29, %34 : vector<2x32xf32>
      %36 = vector.broadcast %33 : vector<2x1xf32> to vector<2x32xf32>
      %37 = arith.subf %29, %36 : vector<2x32xf32>
      %38 = arith.mulf %35, %37 : vector<2x32xf32>
      %cst_33 = arith.constant dense<0.000000e+00> : vector<2xf32>
      %39 = vector.multi_reduction <add>, %38, %cst_33 [1] : vector<2x32xf32> to vector<2xf32>
      %40 = vector.shape_cast %39 : vector<2xf32> to vector<2x1xf32>
      %cst_34 = arith.constant 3.200000e+01 : f32
      %41 = vector.broadcast %cst_34 : f32 to vector<2x1xf32>
      %42 = arith.divf %40, %41 : vector<2x1xf32>
      %43 = vector.broadcast %33 : vector<2x1xf32> to vector<2x32xf32>
      %44 = arith.subf %29, %43 : vector<2x32xf32>
      %cst_35 = arith.constant 9.99999974E-6 : f32
      %45 = vector.broadcast %cst_35 : f32 to vector<2x1xf32>
      %46 = arith.addf %42, %45 : vector<2x1xf32>
      %47 = math.rsqrt %46 : vector<2x1xf32>
      %48 = vector.broadcast %47 : vector<2x1xf32> to vector<2x32xf32>
      %49 = arith.mulf %44, %48 : vector<2x32xf32>
      %c0_36 = arith.constant 0 : index
      %c0_37 = arith.constant 0 : index
      %50 = vector.load %arg7[%c0_36, %c0_37] : memref<1x32xf32, #tpu.memory_space<vmem>>, vector<1x32xf32>
      %51 = vector.broadcast %50 : vector<1x32xf32> to vector<2x32xf32>
      %52 = arith.mulf %49, %51 : vector<2x32xf32>
      %c0_38 = arith.constant 0 : index
      %c0_39 = arith.constant 0 : index
      %53 = vector.load %arg8[%c0_38, %c0_39] : memref<1x32xf32, #tpu.memory_space<vmem>>, vector<1x32xf32>
      %54 = vector.broadcast %53 : vector<1x32xf32> to vector<2x32xf32>
      %55 = arith.addf %52, %54 : vector<2x32xf32>
      %cst_40 = arith.constant 0.000000e+00 : f32
      %56 = vector.broadcast %cst_40 : f32 to vector<2x32xf32>
      %57 = arith.maximumf %55, %56 : vector<2x32xf32>
      %c0_41 = arith.constant 0 : index
      %c0_42 = arith.constant 0 : index
      %58 = vector.load %arg9[%c0_41, %c0_42] : memref<32x2xf32, #tpu.memory_space<vmem>>, vector<32x2xf32>
      %cst_43 = arith.constant dense<0.000000e+00> : vector<2x2xf32>
      %59 = tpu.matmul %57, %58, %cst_43 {dimension_numbers = #tpu.dot_dimension_numbers<[1], [0], [0], [1], [0, 0, 1, 1], [], []>} : vector<2x32xf32>, vector<32x2xf32>, vector<2x2xf32> -> vector<2x2xf32>
      %c0_44 = arith.constant 0 : index
      %c0_45 = arith.constant 0 : index
      %60 = vector.load %arg10[%c0_44, %c0_45] : memref<1x2xf32, #tpu.memory_space<vmem>>, vector<1x2xf32>
      %61 = vector.broadcast %60 : vector<1x2xf32> to vector<2x2xf32>
      %62 = arith.addf %59, %61 : vector<2x2xf32>
      %c0_46 = arith.constant 0 : index
      %c0_47 = arith.constant 0 : index
      %63 = vector.load %arg11[%c0_46, %c0_47] : memref<2x2xf32, #tpu.memory_space<vmem>>, vector<2x2xf32>
      tpu.vector_store %arg11[%c0_46, %c0_47], %62 {strides = array<i32>} : memref<2x2xf32, #tpu.memory_space<vmem>>, vector<2x2xf32>,
    } else {
    }
    return
  }
  func.func @transform_0(%arg0: i32, %arg1: i32) -> (i32, i32, i32) {
    %c0_i32 = arith.constant 0 : i32
    %c0_i32_0 = arith.constant 0 : i32
    return %arg0, %arg1, %c0_i32 : i32, i32, i32
  }
  func.func @transform_1(%arg0: i32, %arg1: i32) -> (i32, i32, i32) {
    %c0_i32 = arith.constant 0 : i32
    %c0_i32_0 = arith.constant 0 : i32
    return %arg0, %arg1, %c0_i32 : i32, i32, i32
  }
  func.func @transform_2(%arg0: i32, %arg1: i32) -> (i32, i32) {
    %c0_i32 = arith.constant 0 : i32
    %c0_i32_0 = arith.constant 0 : i32
    %c0_i32_1 = arith.constant 0 : i32
    return %c0_i32, %c0_i32_0 : i32, i32
  }
  func.func @transform_3(%arg0: i32, %arg1: i32) -> (i32, i32) {
    %c0_i32 = arith.constant 0 : i32
    %c0_i32_0 = arith.constant 0 : i32
    %c0_i32_1 = arith.constant 0 : i32
    return %c0_i32, %c0_i32_0 : i32, i32
  }
  func.func @transform_4(%arg0: i32, %arg1: i32) -> (i32, i32) {
    %c0_i32 = arith.constant 0 : i32
    %c0_i32_0 = arith.constant 0 : i32
    %c0_i32_1 = arith.constant 0 : i32
    return %c0_i32, %c0_i32_0 : i32, i32
  }
  func.func @transform_5(%arg0: i32, %arg1: i32) -> (i32, i32) {
    %c0_i32 = arith.constant 0 : i32
    %c0_i32_0 = arith.constant 0 : i32
    %c0_i32_1 = arith.constant 0 : i32
    return %c0_i32, %c0_i32_0 : i32, i32
  }
  func.func @transform_6(%arg0: i32, %arg1: i32) -> (i32, i32) {
    %c0_i32 = arith.constant 0 : i32
    %c0_i32_0 = arith.constant 0 : i32
    %c0_i32_1 = arith.constant 0 : i32
    return %c0_i32, %c0_i32_0 : i32, i32
  }
  func.func @transform_7(%arg0: i32, %arg1: i32) -> (i32, i32) {
    %c0_i32 = arith.constant 0 : i32
    %c0_i32_0 = arith.constant 0 : i32
    %c0_i32_1 = arith.constant 0 : i32
    return %c0_i32, %c0_i32_0 : i32, i32
  }
  func.func @transform_8(%arg0: i32, %arg1: i32) -> (i32, i32) {
    %c0_i32 = arith.constant 0 : i32
    %c0_i32_0 = arith.constant 0 : i32
    %c0_i32_1 = arith.constant 0 : i32
    return %c0_i32, %c0_i32_0 : i32, i32
  }
  func.func @transform_9(%arg0: i32, %arg1: i32) -> (i32, i32) {
    %c0_i32 = arith.constant 0 : i32
    %c0_i32_0 = arith.constant 0 : i32
    return %arg0, %c0_i32 : i32, i32
  }
}

module attributes {stable_mosaic.version = 11 : i64} {
  func.func @_discriminator_kernel(%arg0: i32, %arg1: i32, %arg2: memref<2x8x32xf32, #tpu.memory_space<vmem>>, %arg3: memref<2x8x32xf32, #tpu.memory_space<vmem>>, %arg4: memref<32x32xf32, #tpu.memory_space<vmem>>, %arg5: memref<32x32xf32, #tpu.memory_space<vmem>>, %arg6: memref<1x32xf32, #tpu.memory_space<vmem>>, %arg7: memref<1x32xf32, #tpu.memory_space<vmem>>, %arg8: memref<1x32xf32, #tpu.memory_space<vmem>>, %arg9: memref<32x2xf32, #tpu.memory_space<vmem>>, %arg10: memref<1x2xf32, #tpu.memory_space<vmem>>, %arg11: memref<2x2xf32, #tpu.memory_space<vmem>>, %arg12: memref<2x32xf32, #tpu.memory_space<vmem>>, %arg13: memref<2x32xf32, #tpu.memory_space<vmem>>) attributes {dimension_semantics = [#tpu.dimension_semantics<parallel>, #tpu.dimension_semantics<arbitrary>], iteration_bounds = array<i64: 1, 1>, scalar_prefetch = 0 : i64, scratch_operands = 2 : i64, tpu.core_type = #tpu.core_type<tc>, window_params = [{transform_indices = @transform_0, window_bounds = array<i64: 2, 8, 32>}, {transform_indices = @transform_1, window_bounds = array<i64: 2, 8, 32>}, {pipeline_mode = #tpu.pipeline_mode<synchronous>, transform_indices = @transform_2, window_bounds = array<i64: 32, 32>}, {pipeline_mode = #tpu.pipeline_mode<synchronous>, transform_indices = @transform_3, window_bounds = array<i64: 32, 32>}, {pipeline_mode = #tpu.pipeline_mode<synchronous>, transform_indices = @transform_4, window_bounds = array<i64: 1, 32>}, {pipeline_mode = #tpu.pipeline_mode<synchronous>, transform_indices = @transform_5, window_bounds = array<i64: 1, 32>}, {pipeline_mode = #tpu.pipeline_mode<synchronous>, transform_indices = @transform_6, window_bounds = array<i64: 1, 32>}, {pipeline_mode = #tpu.pipeline_mode<synchronous>, transform_indices = @transform_7, window_bounds = array<i64: 32, 2>}, {pipeline_mode = #tpu.pipeline_mode<synchronous>, transform_indices = @transform_8, window_bounds = array<i64: 1, 2>}, {transform_indices = @transform_9, window_bounds = array<i64: 2, 2>}]} {
    %c0_i32 = arith.constant 0 : i32
    %0 = arith.cmpi eq, %arg1, %c0_i32 : i32
    %1 = arith.extui %0 : i1 to i32
    %c0_i32_0 = arith.constant 0 : i32
    %2 = arith.cmpi ne, %1, %c0_i32_0 : i32
    scf.if %2 {
      %cst_17 = arith.constant 0.000000e+00 : f32
      %16 = vector.broadcast %cst_17 : f32 to vector<2x32xf32>
      %c0_18 = arith.constant 0 : index
      %c0_19 = arith.constant 0 : index
      %17 = vector.load %arg12[%c0_18, %c0_19] : memref<2x32xf32, #tpu.memory_space<vmem>>, vector<2x32xf32>
      tpu.vector_store %arg12[%c0_18, %c0_19], %16 {strides = array<i32>} : memref<2x32xf32, #tpu.memory_space<vmem>>, vector<2x32xf32>,
      %cst_20 = arith.constant 0.000000e+00 : f32
      %18 = vector.broadcast %cst_20 : f32 to vector<2x32xf32>
      %c0_21 = arith.constant 0 : index
      %c0_22 = arith.constant 0 : index
      %19 = vector.load %arg13[%c0_21, %c0_22] : memref<2x32xf32, #tpu.memory_space<vmem>>, vector<2x32xf32>
      tpu.vector_store %arg13[%c0_21, %c0_22], %18 {strides = array<i32>} : memref<2x32xf32, #tpu.memory_space<vmem>>, vector<2x32xf32>,
    } else {
    }
    %c0 = arith.constant 0 : index
    %c0_1 = arith.constant 0 : index
    %3 = vector.load %arg12[%c0, %c0_1] : memref<2x32xf32, #tpu.memory_space<vmem>>, vector<2x32xf32>
    %c0_2 = arith.constant 0 : index
    %c0_3 = arith.constant 0 : index
    %c0_4 = arith.constant 0 : index
    %4 = vector.load %arg2[%c0_2, %c0_3, %c0_4] : memref<2x8x32xf32, #tpu.memory_space<vmem>>, vector<2x8x32xf32>
    %cst = arith.constant dense<0.000000e+00> : vector<2x32xf32>
    %5 = vector.multi_reduction <add>, %4, %cst [1] : vector<2x8x32xf32> to vector<2x32xf32>
    %6 = arith.addf %3, %5 : vector<2x32xf32>
    %c0_5 = arith.constant 0 : index
    %c0_6 = arith.constant 0 : index
    %7 = vector.load %arg12[%c0_5, %c0_6] : memref<2x32xf32, #tpu.memory_space<vmem>>, vector<2x32xf32>
    tpu.vector_store %arg12[%c0_5, %c0_6], %6 {strides = array<i32>} : memref<2x32xf32, #tpu.memory_space<vmem>>, vector<2x32xf32>,
    %c0_7 = arith.constant 0 : index
    %c0_8 = arith.constant 0 : index
    %8 = vector.load %arg13[%c0_7, %c0_8] : memref<2x32xf32, #tpu.memory_space<vmem>>, vector<2x32xf32>
    %c0_9 = arith.constant 0 : index
    %c0_10 = arith.constant 0 : index
    %c0_11 = arith.constant 0 : index
    %9 = vector.load %arg3[%c0_9, %c0_10, %c0_11] : memref<2x8x32xf32, #tpu.memory_space<vmem>>, vector<2x8x32xf32>
    %cst_12 = arith.constant dense<0.000000e+00> : vector<2x32xf32>
    %10 = vector.multi_reduction <add>, %9, %cst_12 [1] : vector<2x8x32xf32> to vector<2x32xf32>
    %11 = arith.addf %8, %10 : vector<2x32xf32>
    %c0_13 = arith.constant 0 : index
    %c0_14 = arith.constant 0 : index
    %12 = vector.load %arg13[%c0_13, %c0_14] : memref<2x32xf32, #tpu.memory_space<vmem>>, vector<2x32xf32>
    tpu.vector_store %arg13[%c0_13, %c0_14], %11 {strides = array<i32>} : memref<2x32xf32, #tpu.memory_space<vmem>>, vector<2x32xf32>,
    %c0_i32_15 = arith.constant 0 : i32
    %13 = arith.cmpi eq, %arg1, %c0_i32_15 : i32
    %14 = arith.extui %13 : i1 to i32
    %c0_i32_16 = arith.constant 0 : i32
    %15 = arith.cmpi ne, %14, %c0_i32_16 : i32
    scf.if %15 {
      %c0_17 = arith.constant 0 : index
      %c0_18 = arith.constant 0 : index
      %16 = vector.load %arg12[%c0_17, %c0_18] : memref<2x32xf32, #tpu.memory_space<vmem>>, vector<2x32xf32>
      %cst_19 = arith.constant 1.250000e-01 : f32
      %17 = vector.broadcast %cst_19 : f32 to vector<2x32xf32>
      %18 = arith.mulf %16, %17 : vector<2x32xf32>
      %c0_20 = arith.constant 0 : index
      %c0_21 = arith.constant 0 : index
      %19 = vector.load %arg13[%c0_20, %c0_21] : memref<2x32xf32, #tpu.memory_space<vmem>>, vector<2x32xf32>
      %cst_22 = arith.constant 1.250000e-01 : f32
      %20 = vector.broadcast %cst_22 : f32 to vector<2x32xf32>
      %21 = arith.mulf %19, %20 : vector<2x32xf32>
      %c0_23 = arith.constant 0 : index
      %c0_24 = arith.constant 0 : index
      %22 = vector.load %arg4[%c0_23, %c0_24] : memref<32x32xf32, #tpu.memory_space<vmem>>, vector<32x32xf32>
      %cst_25 = arith.constant dense<0.000000e+00> : vector<2x32xf32>
      %23 = tpu.matmul %18, %22, %cst_25 {dimension_numbers = #tpu.dot_dimension_numbers<[1], [0], [0], [1], [0, 0, 1, 1], [], []>} : vector<2x32xf32>, vector<32x32xf32>, vector<2x32xf32> -> vector<2x32xf32>
      %c0_26 = arith.constant 0 : index
      %c0_27 = arith.constant 0 : index
      %24 = vector.load %arg5[%c0_26, %c0_27] : memref<32x32xf32, #tpu.memory_space<vmem>>, vector<32x32xf32>
      %cst_28 = arith.constant dense<0.000000e+00> : vector<2x32xf32>
      %25 = tpu.matmul %21, %24, %cst_28 {dimension_numbers = #tpu.dot_dimension_numbers<[1], [0], [0], [1], [0, 0, 1, 1], [], []>} : vector<2x32xf32>, vector<32x32xf32>, vector<2x32xf32> -> vector<2x32xf32>
      %26 = arith.addf %23, %25 : vector<2x32xf32>
      %c0_29 = arith.constant 0 : index
      %c0_30 = arith.constant 0 : index
      %27 = vector.load %arg6[%c0_29, %c0_30] : memref<1x32xf32, #tpu.memory_space<vmem>>, vector<1x32xf32>
      %28 = vector.broadcast %27 : vector<1x32xf32> to vector<2x32xf32>
      %29 = arith.addf %26, %28 : vector<2x32xf32>
      %cst_31 = arith.constant dense<0.000000e+00> : vector<2xf32>
      %30 = vector.multi_reduction <add>, %29, %cst_31 [1] : vector<2x32xf32> to vector<2xf32>
      %31 = vector.shape_cast %30 : vector<2xf32> to vector<2x1xf32>
      %cst_32 = arith.constant 3.200000e+01 : f32
      %32 = vector.broadcast %cst_32 : f32 to vector<2x1xf32>
      %33 = arith.divf %31, %32 : vector<2x1xf32>
      %34 = vector.broadcast %33 : vector<2x1xf32> to vector<2x32xf32>
      %35 = arith.subf %29, %34 : vector<2x32xf32>
      %36 = vector.broadcast %33 : vector<2x1xf32> to vector<2x32xf32>
      %37 = arith.subf %29, %36 : vector<2x32xf32>
      %38 = arith.mulf %35, %37 : vector<2x32xf32>
      %cst_33 = arith.constant dense<0.000000e+00> : vector<2xf32>
      %39 = vector.multi_reduction <add>, %38, %cst_33 [1] : vector<2x32xf32> to vector<2xf32>
      %40 = vector.shape_cast %39 : vector<2xf32> to vector<2x1xf32>
      %cst_34 = arith.constant 3.200000e+01 : f32
      %41 = vector.broadcast %cst_34 : f32 to vector<2x1xf32>
      %42 = arith.divf %40, %41 : vector<2x1xf32>
      %43 = vector.broadcast %33 : vector<2x1xf32> to vector<2x32xf32>
      %44 = arith.subf %29, %43 : vector<2x32xf32>
      %cst_35 = arith.constant 9.99999974E-6 : f32
      %45 = vector.broadcast %cst_35 : f32 to vector<2x1xf32>
      %46 = arith.addf %42, %45 : vector<2x1xf32>
      %47 = math.rsqrt %46 : vector<2x1xf32>
      %48 = vector.broadcast %47 : vector<2x1xf32> to vector<2x32xf32>
      %49 = arith.mulf %44, %48 : vector<2x32xf32>
      %c0_36 = arith.constant 0 : index
      %c0_37 = arith.constant 0 : index
      %50 = vector.load %arg7[%c0_36, %c0_37] : memref<1x32xf32, #tpu.memory_space<vmem>>, vector<1x32xf32>
      %51 = vector.broadcast %50 : vector<1x32xf32> to vector<2x32xf32>
      %52 = arith.mulf %49, %51 : vector<2x32xf32>
      %c0_38 = arith.constant 0 : index
      %c0_39 = arith.constant 0 : index
      %53 = vector.load %arg8[%c0_38, %c0_39] : memref<1x32xf32, #tpu.memory_space<vmem>>, vector<1x32xf32>
      %54 = vector.broadcast %53 : vector<1x32xf32> to vector<2x32xf32>
      %55 = arith.addf %52, %54 : vector<2x32xf32>
      %cst_40 = arith.constant 0.000000e+00 : f32
      %56 = vector.broadcast %cst_40 : f32 to vector<2x32xf32>
      %57 = arith.maximumf %55, %56 : vector<2x32xf32>
      %c0_41 = arith.constant 0 : index
      %c0_42 = arith.constant 0 : index
      %58 = vector.load %arg9[%c0_41, %c0_42] : memref<32x2xf32, #tpu.memory_space<vmem>>, vector<32x2xf32>
      %cst_43 = arith.constant dense<0.000000e+00> : vector<2x2xf32>
      %59 = tpu.matmul %57, %58, %cst_43 {dimension_numbers = #tpu.dot_dimension_numbers<[1], [0], [0], [1], [0, 0, 1, 1], [], []>} : vector<2x32xf32>, vector<32x2xf32>, vector<2x2xf32> -> vector<2x2xf32>
      %c0_44 = arith.constant 0 : index
      %c0_45 = arith.constant 0 : index
      %60 = vector.load %arg10[%c0_44, %c0_45] : memref<1x2xf32, #tpu.memory_space<vmem>>, vector<1x2xf32>
      %61 = vector.broadcast %60 : vector<1x2xf32> to vector<2x2xf32>
      %62 = arith.addf %59, %61 : vector<2x2xf32>
      %c0_46 = arith.constant 0 : index
      %c0_47 = arith.constant 0 : index
      %63 = vector.load %arg11[%c0_46, %c0_47] : memref<2x2xf32, #tpu.memory_space<vmem>>, vector<2x2xf32>
      tpu.vector_store %arg11[%c0_46, %c0_47], %62 {strides = array<i32>} : memref<2x2xf32, #tpu.memory_space<vmem>>, vector<2x2xf32>,
    } else {
    }
    return
  }
  func.func @transform_0(%arg0: i32, %arg1: i32) -> (i32, i32, i32) {
    %c0_i32 = arith.constant 0 : i32
    %c0_i32_0 = arith.constant 0 : i32
    return %arg0, %arg1, %c0_i32 : i32, i32, i32
  }
  func.func @transform_1(%arg0: i32, %arg1: i32) -> (i32, i32, i32) {
    %c0_i32 = arith.constant 0 : i32
    %c0_i32_0 = arith.constant 0 : i32
    return %arg0, %arg1, %c0_i32 : i32, i32, i32
  }
  func.func @transform_2(%arg0: i32, %arg1: i32) -> (i32, i32) {
    %c0_i32 = arith.constant 0 : i32
    %c0_i32_0 = arith.constant 0 : i32
    %c0_i32_1 = arith.constant 0 : i32
    return %c0_i32, %c0_i32_0 : i32, i32
  }
  func.func @transform_3(%arg0: i32, %arg1: i32) -> (i32, i32) {
    %c0_i32 = arith.constant 0 : i32
    %c0_i32_0 = arith.constant 0 : i32
    %c0_i32_1 = arith.constant 0 : i32
    return %c0_i32, %c0_i32_0 : i32, i32
  }
  func.func @transform_4(%arg0: i32, %arg1: i32) -> (i32, i32) {
    %c0_i32 = arith.constant 0 : i32
    %c0_i32_0 = arith.constant 0 : i32
    %c0_i32_1 = arith.constant 0 : i32
    return %c0_i32, %c0_i32_0 : i32, i32
  }
  func.func @transform_5(%arg0: i32, %arg1: i32) -> (i32, i32) {
    %c0_i32 = arith.constant 0 : i32
    %c0_i32_0 = arith.constant 0 : i32
    %c0_i32_1 = arith.constant 0 : i32
    return %c0_i32, %c0_i32_0 : i32, i32
  }
  func.func @transform_6(%arg0: i32, %arg1: i32) -> (i32, i32) {
    %c0_i32 = arith.constant 0 : i32
    %c0_i32_0 = arith.constant 0 : i32
    %c0_i32_1 = arith.constant 0 : i32
    return %c0_i32, %c0_i32_0 : i32, i32
  }
  func.func @transform_7(%arg0: i32, %arg1: i32) -> (i32, i32) {
    %c0_i32 = arith.constant 0 : i32
    %c0_i32_0 = arith.constant 0 : i32
    %c0_i32_1 = arith.constant 0 : i32
    return %c0_i32, %c0_i32_0 : i32, i32
  }
  func.func @transform_8(%arg0: i32, %arg1: i32) -> (i32, i32) {
    %c0_i32 = arith.constant 0 : i32
    %c0_i32_0 = arith.constant 0 : i32
    %c0_i32_1 = arith.constant 0 : i32
    return %c0_i32, %c0_i32_0 : i32, i32
  }
  func.func @transform_9(%arg0: i32, %arg1: i32) -> (i32, i32) {
    %c0_i32 = arith.constant 0 : i32
    %c0_i32_0 = arith.constant 0 : i32
    return %arg0, %c0_i32 : i32, i32
  }
}

</mosaic_0001>

<llo_original>
// kernel: tpu_custom_call.1
$region0: #{tpu_custom_call.1}
  #allocation0 [shape = 'u32[]', space=smem, size = 0x4, offset = 0x4, fixed_abs, tag = 'smem constant byte address 0x4 - core index']
  #allocation1 [shape = 'u32[144,128]{1,0:T(1,128)}', space=vmem, size = 0x12000, scoped, tag = 'internal scratch']
  #allocation2 [shape = 'f32[2,32]{1,0:T(2,128)}', space=vmem, size = 0x400, scoped, tag = 'scratch operand']
  #allocation3 [shape = 'f32[2,32]{1,0:T(2,128)}', space=vmem, size = 0x400, scoped, tag = 'scratch operand']
  %s0 = inlined_call_operand.hbm [shape: f32[2,8,32], index: 0, kind: input, shape index: {}]
  %s1 = inlined_call_operand.hbm [shape: f32[2,8,32], index: 1, kind: input, shape index: {}]
  %s2 = inlined_call_operand.vmem [shape: f32[32,32], index: 2, kind: input, shape index: {}]
  %s3 = inlined_call_operand.hbm [shape: f32[32,32], index: 3, kind: input, shape index: {}]
  %s4 = inlined_call_operand.vmem [shape: f32[1,32], index: 4, kind: input, shape index: {}]
  %s5 = inlined_call_operand.vmem [shape: f32[1,32], index: 5, kind: input, shape index: {}]
  %s6 = inlined_call_operand.vmem [shape: f32[1,32], index: 6, kind: input, shape index: {}]
  %s7 = inlined_call_operand.vmem [shape: f32[32,2], index: 7, kind: input, shape index: {}]
  %s8 = inlined_call_operand.vmem [shape: f32[1,2], index: 8, kind: input, shape index: {}]
  %s9 = inlined_call_operand.hbm [shape: f32[2,2], index: 9, kind: output, shape index: {}]
  %s10 = sld [smem:[#allocation0]]
  $region66: #{tpu_custom_call.1} parent=0
    _
  %s12 = ssub.s32 1, %s10
  %s13 = scalar_select 0, %s12, %s10
  $region1: #{tpu_custom_call.1} parent=0
    #allocation4 [shape = 'u8[8192]{0}', space=vmem, size = 0x2000, scoped, tag = 'input window, operand 0, single buffered']
    #allocation5 [shape = 's32[1]{0}', space=sflag, size = 0x4, scoped, tag = 'scoped memory for tpu_custom_call.1']
    #allocation6 [shape = 's32[1]{0}', space=sflag, size = 0x4, scoped, tag = 'scoped memory for tpu_custom_call.1']
    #allocation7 [shape = 'u8[8192]{0}', space=vmem, size = 0x2000, scoped, tag = 'input window, operand 1, single buffered']
    #allocation8 [shape = 's32[1]{0}', space=sflag, size = 0x4, scoped, tag = 'scoped memory for tpu_custom_call.1']
    #allocation9 [shape = 'u8[16384]{0}', space=vmem, size = 0x4000, scoped, tag = 'input window, operand 3, single buffered']
    #allocation10 [shape = 'u8[1024]{0}', space=vmem, size = 0x400, scoped, tag = 'output window, operand 0, single buffered']
    %14 = vsyncpa [#allocation5], 0
    %15 = vsyncpa [#allocation8], 0
    %16 = vsyncpa [#allocation6], 0
    // Predicated region
    $region2: #{tpu_custom_call.1} parent=1 // pred_check
      _
    $region3: #{tpu_custom_call.1} parent=1 // pred_check_branch
      %18 = sbr.rel (0) target = $region5
    $region4: #{tpu_custom_call.1} parent=1 // pred_region
      %s20 = ssub.s32 256, 256
      %21 = vsyncadd [#allocation5], %s20
      %s22 = sshll.u32 [#allocation4], 4
      %s23 = int_to_ptr.vmem [resolvable:$true] %s22
      %28 = dma.hbm_to_vmem [thread:$0]  %s0, 256, %s23, [#allocation5], 128, 128, 8
    $region5: #{tpu_custom_call.1} parent=1 // pred_fallthru
      _
    // Predicated region
    $region6: #{tpu_custom_call.1} parent=1 // pred_check
      _
    $region7: #{tpu_custom_call.1} parent=1 // pred_check_branch
      %30 = sbr.rel (0) target = $region9
    $region8: #{tpu_custom_call.1} parent=1 // pred_region
      %s32 = ssub.s32 256, 256
      %33 = vsyncadd [#allocation8], %s32
      %s34 = sshll.u32 [#allocation7], 4
      %s35 = int_to_ptr.vmem [resolvable:$true] %s34
      %40 = dma.hbm_to_vmem [thread:$0]  %s1, 256, %s35, [#allocation8], 128, 128, 8
    $region9: #{tpu_custom_call.1} parent=1 // pred_fallthru
      _
    // Predicated region
    $region10: #{tpu_custom_call.1} parent=1 // pred_check
      _
    $region11: #{tpu_custom_call.1} parent=1 // pred_check_branch
      %42 = sbr.rel (0) target = $region13
    $region12: #{tpu_custom_call.1} parent=1 // pred_region
      _
    $region13: #{tpu_custom_call.1} parent=1 // pred_fallthru
      _
    // Predicated region
    $region14: #{tpu_custom_call.1} parent=1 // pred_check
      _
    $region15: #{tpu_custom_call.1} parent=1 // pred_check_branch
      %44 = sbr.rel (0) target = $region17
    $region16: #{tpu_custom_call.1} parent=1 // pred_region
      %s46 = ssub.s32 512, 512
      %47 = vsyncadd [#allocation8], %s46
      %s48 = sshll.u32 [#allocation9], 4
      %s49 = int_to_ptr.vmem [resolvable:$true] %s48
      %54 = dma.hbm_to_vmem [thread:$0]  %s3, 512, %s49, [#allocation8], 128, 128, 8
    $region17: #{tpu_custom_call.1} parent=1 // pred_fallthru
      _
    // Predicated region
    $region18: #{tpu_custom_call.1} parent=1 // pred_check
      _
    $region19: #{tpu_custom_call.1} parent=1 // pred_check_branch
      %56 = sbr.rel (0) target = $region21
    $region20: #{tpu_custom_call.1} parent=1 // pred_region
      _
    $region21: #{tpu_custom_call.1} parent=1 // pred_fallthru
      _
    // Predicated region
    $region22: #{tpu_custom_call.1} parent=1 // pred_check
      _
    $region23: #{tpu_custom_call.1} parent=1 // pred_check_branch
      %58 = sbr.rel (0) target = $region25
    $region24: #{tpu_custom_call.1} parent=1 // pred_region
      _
    $region25: #{tpu_custom_call.1} parent=1 // pred_fallthru
      _
    // Predicated region
    $region26: #{tpu_custom_call.1} parent=1 // pred_check
      _
    $region27: #{tpu_custom_call.1} parent=1 // pred_check_branch
      %60 = sbr.rel (0) target = $region29
    $region28: #{tpu_custom_call.1} parent=1 // pred_region
      _
    $region29: #{tpu_custom_call.1} parent=1 // pred_fallthru
      _
    // Predicated region
    $region30: #{tpu_custom_call.1} parent=1 // pred_check
      _
    $region31: #{tpu_custom_call.1} parent=1 // pred_check_branch
      %62 = sbr.rel (0) target = $region33
    $region32: #{tpu_custom_call.1} parent=1 // pred_region
      _
    $region33: #{tpu_custom_call.1} parent=1 // pred_fallthru
      _
    // Predicated region
    $region34: #{tpu_custom_call.1} parent=1 // pred_check
      _
    $region35: #{tpu_custom_call.1} parent=1 // pred_check_branch
      %64 = sbr.rel (0) target = $region37
    $region36: #{tpu_custom_call.1} parent=1 // pred_region
      _
    $region37: #{tpu_custom_call.1} parent=1 // pred_fallthru
      _
    // Predicated region
    $region38: #{tpu_custom_call.1} parent=1 // pred_check
      _
    $region39: #{tpu_custom_call.1} parent=1 // pred_check_branch
      %66 = sbr.rel (0) target = $region41
    $region40: #{tpu_custom_call.1} parent=1 // pred_region
      %67 = dma.done [#allocation5], 256
    $region41: #{tpu_custom_call.1} parent=1 // pred_fallthru
      _
    // Predicated region
    $region42: #{tpu_custom_call.1} parent=1 // pred_check
      _
    $region43: #{tpu_custom_call.1} parent=1 // pred_check_branch
      %69 = sbr.rel (0) target = $region45
    $region44: #{tpu_custom_call.1} parent=1 // pred_region
      %70 = dma.done [#allocation8], 256
    $region45: #{tpu_custom_call.1} parent=1 // pred_fallthru
      _
    // Predicated region
    $region46: #{tpu_custom_call.1} parent=1 // pred_check
      _
    $region47: #{tpu_custom_call.1} parent=1 // pred_check_branch
      %72 = sbr.rel (0) target = $region49
    $region48: #{tpu_custom_call.1} parent=1 // pred_region
      %73 = dma.done [#allocation8], 512
    $region49: #{tpu_custom_call.1} parent=1 // pred_fallthru
      _
    %p74 = scmp.eq.s32.totalorder 0, 0
    // Predicated region
    $region50: #{tpu_custom_call.1} parent=1 // pred_check
      %p75 = pneg %p74
    $region51: #{tpu_custom_call.1} parent=1 // pred_check_branch
      %77 = sbr.rel (%p75) target = $region53
    $region52: #{tpu_custom_call.1} parent=1 // pred_region
      %vm78 = vcmask 254976
      %79 = vst.msk [vmem:[#allocation2] sm:$0x3] %vm78, 0.0
      %80 = vst.msk [vmem:[#allocation3] sm:$0x3] %vm78, 0.0
    $region53: #{tpu_custom_call.1} parent=1 // pred_fallthru
      _
    %v81 = vld [vmem:[#allocation2] sm:$0x3]
    %v82 = vld [vmem:[#allocation4] sm:$0xff]
    %v83 = vld [vmem:[#allocation4 + $0x8] sm:$0xff]
    %vm84 = vcmask 261120
    %v85 = vsel %vm84, %v82, 0.0
    %v86 = vrot.slane %v85, 4
    %v87 = vadd.f32 %v85, %v86
    %v88 = vrot.slane %v87, 2
    %v89 = vadd.f32 %v87, %v88
    %v90 = vrot.slane %v89, 1
    %v91 = vadd.f32 %v89, %v90
    %v92 = vsel %vm84, %v83, 0.0
    %v93 = vrot.slane %v92, 4
    %v94 = vadd.f32 %v92, %v93
    %v95 = vrot.slane %v94, 2
    %v96 = vadd.f32 %v94, %v95
    %v97 = vrot.slane %v96, 1
    %v98 = vadd.f32 %v96, %v97
    %vm101 = vcmask 1041409
    %v102 = vsel %vm101, %v98, %v91
    %v104 = vadd.f32 %v81, %v102
    %vm105 = vcmask 254976
    %106 = vst.msk [vmem:[#allocation2] sm:$0x3] %vm105, %v104
    %v107 = vld [vmem:[#allocation3] sm:$0x3]
    %v108 = vld [vmem:[#allocation7] sm:$0xff]
    %v109 = vld [vmem:[#allocation7 + $0x8] sm:$0xff]
    %v110 = vsel %vm84, %v108, 0.0
    %v111 = vrot.slane %v110, 4
    %v112 = vadd.f32 %v110, %v111
    %v113 = vrot.slane %v112, 2
    %v114 = vadd.f32 %v112, %v113
    %v115 = vrot.slane %v114, 1
    %v116 = vadd.f32 %v114, %v115
    %v117 = vsel %vm84, %v109, 0.0
    %v118 = vrot.slane %v117, 4
    %v119 = vadd.f32 %v117, %v118
    %v120 = vrot.slane %v119, 2
    %v121 = vadd.f32 %v119, %v120
    %v122 = vrot.slane %v121, 1
    %v123 = vadd.f32 %v121, %v122
    %v126 = vsel %vm101, %v123, %v116
    %v128 = vadd.f32 %v107, %v126
    %129 = vst.msk [vmem:[#allocation3] sm:$0x3] %vm105, %v128
    // Predicated region
    $region54: #{tpu_custom_call.1} parent=1 // pred_check
      %p130 = pneg %p74
    $region55: #{tpu_custom_call.1} parent=1 // pred_check_branch
      %132 = sbr.rel (%p130) target = $region57
    $region56: #{tpu_custom_call.1} parent=1 // pred_region
      %v133 = vld [vmem:[#allocation2] sm:$0x3]
      %v134 = vmul.f32 %v133, 0.125
      %v135 = vld [vmem:[#allocation3] sm:$0x3]
      %v136 = vmul.f32 %v135, 0.125
      %v137 = vld [vmem:[%s2] sm:$0xff]
      %v138 = vld [vmem:[%s2 + $0x8] sm:$0xff]
      %v139 = vld [vmem:[%s2 + $0x10] sm:$0xff]
      %v140 = vld [vmem:[%s2 + $0x18] sm:$0xff]
      %v141 = vld [vmem:[#allocation9] sm:$0xff]
      %v142 = vld [vmem:[#allocation9 + $0x8] sm:$0xff]
      %v143 = vld [vmem:[#allocation9 + $0x10] sm:$0xff]
      %v144 = vld [vmem:[#allocation9 + $0x18] sm:$0xff]
      %v146 = vsel %vm84, %v136, 0
      %148 = vmatprep.subr.mxu0 0.0
      %149 = vmatpush1.msra.mxu0 %v141
      %150 = vmatprep.subr.mxu0 0.0
      %151 = vmatpush1.msra.mxu0 %v142
      %152 = vmatprep.subr.mxu0 0.0
      %153 = vmatpush1.msra.mxu0 %v143
      %154 = vmatprep.subr.mxu0 0.0
      %155 = vmatpush1.msra.mxu0 %v144
      %156 = vmatprep.subr.mxu0 0.0
      %157 = vmatpush1.msra.mxu0 0.0
      %158 = vmatprep.subr.mxu0 0.0
      %159 = vmatpush1.msra.mxu0 0.0
      %160 = vmatprep.subr.mxu0 0.0
      %161 = vmatpush1.msra.mxu0 0.0
      %162 = vmatprep.subr.mxu0 0.0
      %163 = vmatpush1.msra.mxu0 0.0
      %164 = vmatprep.subr.mxu0 0.0
      %165 = vmatpush1.msra.mxu0 0.0
      %166 = vmatprep.subr.mxu0 0.0
      %167 = vmatpush1.msra.mxu0 0.0
      %168 = vmatprep.subr.mxu0 0.0
      %169 = vmatpush1.msra.mxu0 0.0
      %170 = vmatprep.subr.mxu0 0.0
      %171 = vmatpush1.msra.mxu0 0.0
      %172 = vmatprep.subr.mxu0 0.0
      %173 = vmatpush1.msra.mxu0 0.0
      %174 = vmatprep.subr.mxu0 0.0
      %175 = vmatpush1.msra.mxu0 0.0
      %176 = vmatprep.subr.mxu0 0.0
      %177 = vmatpush1.msra.mxu0 0.0
      %178 = vmatprep.subr.mxu0 0.0
      %179 = vmatpush1.msra.mxu0 0.0
      %180 = vmatprep.subr.mxu0 0.0
      %181 = vmatpush1.msra.mxu0 0.0
      %182 = vmatprep.subr.mxu0 0.0
      %183 = vmatpush1.msra.mxu0 0.0
      %184 = vmatprep.subr.mxu0 0.0
      %185 = vmatpush1.msra.mxu0 0.0
      %186 = vmatprep.subr.mxu0 0.0
      %187 = vmatpush1.msra.mxu0 0.0
      %188 = vmatprep.subr.mxu0 0.0
      %189 = vmatpush1.msra.mxu0 0.0
      %190 = vmatprep.subr.mxu0 0.0
      %191 = vmatpush1.msra.mxu0 0.0
      %192 = vmatprep.subr.mxu0 0.0
      %193 = vmatpush1.msra.mxu0 0.0
      %194 = vmatprep.subr.mxu0 0.0
      %195 = vmatpush1.msra.mxu0 0.0
      %196 = vmatprep.subr.mxu0 0.0
      %197 = vmatpush1.msra.mxu0 0.0
      %198 = vmatprep.subr.mxu0 0.0
      %199 = vmatpush1.msra.mxu0 0.0
      %200 = vmatprep.subr.mxu0 0.0
      %201 = vmatpush1.msra.mxu0 0.0
      %202 = vmatprep.subr.mxu0 0.0
      %203 = vmatpush1.msra.mxu0 0.0
      %204 = vmatprep.subr.mxu0 0.0
      %205 = vmatpush1.msra.mxu0 0.0
      %206 = vmatprep.subr.mxu0 0.0
      %207 = vmatpush1.msra.mxu0 0.0
      %208 = vmatprep.subr.mxu0 0.0
      %209 = vmatpush1.msra.mxu0 0.0
      %210 = vmatprep.subr.mxu0 0.0
      %211 = vmatpush1.msra.mxu0 0.0
      %212 = vmatprep.mubr.f32.mxu0 0.0
      %213 = vmatmul.mubr.f32.gmra.mrb[0].mxu0 %v146
      %v214 = vpop.f32.mrb[0].mxu0
      %v215 = vadd.f32 0.0, %v214
      %v216 = vpop.f32.mrb[0].mxu0
      %217 = vdwg.mxu0
      %v219 = vsel %vm84, %v134, 0
      %221 = vmatprep.subr.mxu0 0.0
      %222 = vmatpush1.msra.mxu0 %v137
      %223 = vmatprep.subr.mxu0 0.0
      %224 = vmatpush1.msra.mxu0 %v138
      %225 = vmatprep.subr.mxu0 0.0
      %226 = vmatpush1.msra.mxu0 %v139
      %227 = vmatprep.subr.mxu0 0.0
      %228 = vmatpush1.msra.mxu0 %v140
      %229 = vmatprep.subr.mxu0 0.0
      %230 = vmatpush1.msra.mxu0 0.0
      %231 = vmatprep.subr.mxu0 0.0
      %232 = vmatpush1.msra.mxu0 0.0
      %233 = vmatprep.subr.mxu0 0.0
      %234 = vmatpush1.msra.mxu0 0.0
      %235 = vmatprep.subr.mxu0 0.0
      %236 = vmatpush1.msra.mxu0 0.0
      %237 = vmatprep.subr.mxu0 0.0
      %238 = vmatpush1.msra.mxu0 0.0
      %239 = vmatprep.subr.mxu0 0.0
      %240 = vmatpush1.msra.mxu0 0.0
      %241 = vmatprep.subr.mxu0 0.0
      %242 = vmatpush1.msra.mxu0 0.0
      %243 = vmatprep.subr.mxu0 0.0
      %244 = vmatpush1.msra.mxu0 0.0
      %245 = vmatprep.subr.mxu0 0.0
      %246 = vmatpush1.msra.mxu0 0.0
      %247 = vmatprep.subr.mxu0 0.0
      %248 = vmatpush1.msra.mxu0 0.0
      %249 = vmatprep.subr.mxu0 0.0
      %250 = vmatpush1.msra.mxu0 0.0
      %251 = vmatprep.subr.mxu0 0.0
      %252 = vmatpush1.msra.mxu0 0.0
      %253 = vmatprep.subr.mxu0 0.0
      %254 = vmatpush1.msra.mxu0 0.0
      %255 = vmatprep.subr.mxu0 0.0
      %256 = vmatpush1.msra.mxu0 0.0
      %257 = vmatprep.subr.mxu0 0.0
      %258 = vmatpush1.msra.mxu0 0.0
      %259 = vmatprep.subr.mxu0 0.0
      %260 = vmatpush1.msra.mxu0 0.0
      %261 = vmatprep.subr.mxu0 0.0
      %262 = vmatpush1.msra.mxu0 0.0
      %263 = vmatprep.subr.mxu0 0.0
      %264 = vmatpush1.msra.mxu0 0.0
      %265 = vmatprep.subr.mxu0 0.0
      %266 = vmatpush1.msra.mxu0 0.0
      %267 = vmatprep.subr.mxu0 0.0
      %268 = vmatpush1.msra.mxu0 0.0
      %269 = vmatprep.subr.mxu0 0.0
      %270 = vmatpush1.msra.mxu0 0.0
      %271 = vmatprep.subr.mxu0 0.0
      %272 = vmatpush1.msra.mxu0 0.0
      %273 = vmatprep.subr.mxu0 0.0
      %274 = vmatpush1.msra.mxu0 0.0
      %275 = vmatprep.subr.mxu0 0.0
      %276 = vmatpush1.msra.mxu0 0.0
      %277 = vmatprep.subr.mxu0 0.0
      %278 = vmatpush1.msra.mxu0 0.0
      %279 = vmatprep.subr.mxu0 0.0
      %280 = vmatpush1.msra.mxu0 0.0
      %281 = vmatprep.subr.mxu0 0.0
      %282 = vmatpush1.msra.mxu0 0.0
      %283 = vmatprep.subr.mxu0 0.0
      %284 = vmatpush1.msra.mxu0 0.0
      %285 = vmatprep.mubr.f32.mxu0 0.0
      %286 = vmatmul.mubr.f32.gmra.mrb[0].mxu0 %v219
      %v287 = vpop.f32.mrb[0].mxu0
      %v288 = vadd.f32 %v215, %v287
      %v289 = vpop.f32.mrb[0].mxu0
      %290 = vdwg.mxu0
      %v291 = vld [vmem:[%s4] sm:$0x1]
      %v293 = vlaneseq
      %v294 = vshrl.u32 %v293, 7
      %v295 = vsub.s32 0, %v294
      %v296 = vrot.slane %v291, %v295
      %v298 = vadd.f32 %v288, %v296
      %v299 = vsel %vm105, %v298, 0.0
      %300 = vadd.xlane.f32.xlu0 %v299
      %v301 = vpop.xlane.xlu0 %300
      %v302 = vrcp.pop 32.0
      %v303 = vmul.f32 %v301, %v302
      %v304 = vsub.f32 %v298, %v303
      %v305 = vmul.f32 %v304, %v304
      %v306 = vsel %vm105, %v305, 0.0
      %307 = vadd.xlane.f32.xlu0 %v306
      %v308 = vpop.xlane.xlu0 %307
      %v309 = vmul.f32 %v308, %v302
      %v310 = vadd.f32 %v309, 1e-05
      %v311 = vrsqrt.pop %v310
      %v312 = vmul.f32 %v304, %v311
      %v313 = vld [vmem:[%s5] sm:$0x1]
      %v315 = vlaneseq
      %v316 = vshrl.u32 %v315, 7
      %v317 = vsub.s32 0, %v316
      %v318 = vrot.slane %v313, %v317
      %v320 = vmul.f32 %v312, %v318
      %v321 = vld [vmem:[%s6] sm:$0x1]
      %v323 = vlaneseq
      %v324 = vshrl.u32 %v323, 7
      %v325 = vsub.s32 0, %v324
      %v326 = vrot.slane %v321, %v325
      %v328 = vadd.f32 %v320, %v326
      %v329 = vmax.f32 %v328, 0.0
      %v330 = vld [vmem:[%s7] sm:$0xff]
      %v331 = vld [vmem:[%s7 + $0x8] sm:$0xff]
      %v332 = vld [vmem:[%s7 + $0x10] sm:$0xff]
      %v333 = vld [vmem:[%s7 + $0x18] sm:$0xff]
      %v334 = vld [vmem:[%s8] sm:$0x1]
      %v336 = vlaneseq
      %v337 = vshrl.u32 %v336, 7
      %v338 = vsub.s32 0, %v337
      %v339 = vrot.slane %v334, %v338
      %v342 = vsel %vm84, %v329, 0
      %344 = vmatprep.subr.mxu0 0.0
      %345 = vmatpush1.msra.mxu0 %v330
      %346 = vmatprep.subr.mxu0 0.0
      %347 = vmatpush1.msra.mxu0 %v331
      %348 = vmatprep.subr.mxu0 0.0
      %349 = vmatpush1.msra.mxu0 %v332
      %350 = vmatprep.subr.mxu0 0.0
      %351 = vmatpush1.msra.mxu0 %v333
      %352 = vmatprep.subr.mxu0 0.0
      %353 = vmatpush1.msra.mxu0 0.0
      %354 = vmatprep.subr.mxu0 0.0
      %355 = vmatpush1.msra.mxu0 0.0
      %356 = vmatprep.subr.mxu0 0.0
      %357 = vmatpush1.msra.mxu0 0.0
      %358 = vmatprep.subr.mxu0 0.0
      %359 = vmatpush1.msra.mxu0 0.0
      %360 = vmatprep.subr.mxu0 0.0
      %361 = vmatpush1.msra.mxu0 0.0
      %362 = vmatprep.subr.mxu0 0.0
      %363 = vmatpush1.msra.mxu0 0.0
      %364 = vmatprep.subr.mxu0 0.0
      %365 = vmatpush1.msra.mxu0 0.0
      %366 = vmatprep.subr.mxu0 0.0
      %367 = vmatpush1.msra.mxu0 0.0
      %368 = vmatprep.subr.mxu0 0.0
      %369 = vmatpush1.msra.mxu0 0.0
      %370 = vmatprep.subr.mxu0 0.0
      %371 = vmatpush1.msra.mxu0 0.0
      %372 = vmatprep.subr.mxu0 0.0
      %373 = vmatpush1.msra.mxu0 0.0
      %374 = vmatprep.subr.mxu0 0.0
      %375 = vmatpush1.msra.mxu0 0.0
      %376 = vmatprep.subr.mxu0 0.0
      %377 = vmatpush1.msra.mxu0 0.0
      %378 = vmatprep.subr.mxu0 0.0
      %379 = vmatpush1.msra.mxu0 0.0
      %380 = vmatprep.subr.mxu0 0.0
      %381 = vmatpush1.msra.mxu0 0.0
      %382 = vmatprep.subr.mxu0 0.0
      %383 = vmatpush1.msra.mxu0 0.0
      %384 = vmatprep.subr.mxu0 0.0
      %385 = vmatpush1.msra.mxu0 0.0
      %386 = vmatprep.subr.mxu0 0.0
      %387 = vmatpush1.msra.mxu0 0.0
      %388 = vmatprep.subr.mxu0 0.0
      %389 = vmatpush1.msra.mxu0 0.0
      %390 = vmatprep.subr.mxu0 0.0
      %391 = vmatpush1.msra.mxu0 0.0
      %392 = vmatprep.subr.mxu0 0.0
      %393 = vmatpush1.msra.mxu0 0.0
      %394 = vmatprep.subr.mxu0 0.0
      %395 = vmatpush1.msra.mxu0 0.0
      %396 = vmatprep.subr.mxu0 0.0
      %397 = vmatpush1.msra.mxu0 0.0
      %398 = vmatprep.subr.mxu0 0.0
      %399 = vmatpush1.msra.mxu0 0.0
      %400 = vmatprep.subr.mxu0 0.0
      %401 = vmatpush1.msra.mxu0 0.0
      %402 = vmatprep.subr.mxu0 0.0
      %403 = vmatpush1.msra.mxu0 0.0
      %404 = vmatprep.subr.mxu0 0.0
      %405 = vmatpush1.msra.mxu0 0.0
      %406 = vmatprep.subr.mxu0 0.0
      %407 = vmatpush1.msra.mxu0 0.0
      %408 = vmatprep.mubr.f32.mxu0 0.0
      %409 = vmatmul.mubr.f32.gmra.mrb[0].mxu0 %v342
      %v410 = vpop.f32.mrb[0].mxu0
      %v411 = vadd.f32 %v339, %v410
      %v412 = vpop.f32.mrb[0].mxu0
      %413 = vdwg.mxu0
      %vm414 = vcmask 9216
      %415 = vst.msk [vmem:[#allocation10] sm:$0x3] %vm414, %v411
    $region57: #{tpu_custom_call.1} parent=1 // pred_fallthru
      _
    // Predicated region
    $region58: #{tpu_custom_call.1} parent=1 // pred_check
      _
    $region59: #{tpu_custom_call.1} parent=1 // pred_check_branch
      %417 = sbr.rel (0) target = $region61
    $region60: #{tpu_custom_call.1} parent=1 // pred_region
      %s419 = ssub.s32 32, 32
      %420 = vsyncadd [#allocation6], %s419
      %s422 = sshll.u32 [#allocation10], 4
      %s423 = int_to_ptr.vmem [resolvable:$true] %s422
      %425 = dma.vmem_to_hbm [thread:$0]  %s423, 32, %s9, [#allocation6]
    $region61: #{tpu_custom_call.1} parent=1 // pred_fallthru
      _
    // Predicated region
    $region62: #{tpu_custom_call.1} parent=1 // pred_check
      _
    $region63: #{tpu_custom_call.1} parent=1 // pred_check_branch
      %427 = sbr.rel (0) target = $region65
    $region64: #{tpu_custom_call.1} parent=1 // pred_region
      %428 = dma.done [#allocation6], 32
    $region65: #{tpu_custom_call.1} parent=1 // pred_fallthru
      _
    %429 = vsyncpa [#allocation5], 1
    %430 = vsyncpa [#allocation8], 1
    %431 = vsyncpa [#allocation6], 1

// kernel: tpu_custom_call.1
$region0: #{tpu_custom_call.1}
  #allocation0 [shape = 'u32[]', space=smem, size = 0x4, offset = 0x4, fixed_abs, tag = 'smem constant byte address 0x4 - core index']
  #allocation1 [shape = 'u32[144,128]{1,0:T(1,128)}', space=vmem, size = 0x12000, scoped, tag = 'internal scratch']
  #allocation2 [shape = 'f32[2,32]{1,0:T(2,128)}', space=vmem, size = 0x400, scoped, tag = 'scratch operand']
  #allocation3 [shape = 'f32[2,32]{1,0:T(2,128)}', space=vmem, size = 0x400, scoped, tag = 'scratch operand']
  %s0 = inlined_call_operand.hbm [shape: f32[2,8,32], index: 0, kind: input, shape index: {}]
  %s1 = inlined_call_operand.hbm [shape: f32[2,8,32], index: 1, kind: input, shape index: {}]
  %s2 = inlined_call_operand.vmem [shape: f32[32,32], index: 2, kind: input, shape index: {}]
  %s3 = inlined_call_operand.hbm [shape: f32[32,32], index: 3, kind: input, shape index: {}]
  %s4 = inlined_call_operand.vmem [shape: f32[1,32], index: 4, kind: input, shape index: {}]
  %s5 = inlined_call_operand.vmem [shape: f32[1,32], index: 5, kind: input, shape index: {}]
  %s6 = inlined_call_operand.vmem [shape: f32[1,32], index: 6, kind: input, shape index: {}]
  %s7 = inlined_call_operand.vmem [shape: f32[32,2], index: 7, kind: input, shape index: {}]
  %s8 = inlined_call_operand.vmem [shape: f32[1,2], index: 8, kind: input, shape index: {}]
  %s9 = inlined_call_operand.hbm [shape: f32[2,2], index: 9, kind: output, shape index: {}]
  %s10 = sld [smem:[#allocation0]]
  $region66: #{tpu_custom_call.1} parent=0
    _
  %s12 = ssub.s32 1, %s10
  %s13 = scalar_select 0, %s12, %s10
  $region1: #{tpu_custom_call.1} parent=0
    #allocation4 [shape = 'u8[8192]{0}', space=vmem, size = 0x2000, scoped, tag = 'input window, operand 0, single buffered']
    #allocation5 [shape = 's32[1]{0}', space=sflag, size = 0x4, scoped, tag = 'scoped memory for tpu_custom_call.1']
    #allocation6 [shape = 's32[1]{0}', space=sflag, size = 0x4, scoped, tag = 'scoped memory for tpu_custom_call.1']
    #allocation7 [shape = 'u8[8192]{0}', space=vmem, size = 0x2000, scoped, tag = 'input window, operand 1, single buffered']
    #allocation8 [shape = 's32[1]{0}', space=sflag, size = 0x4, scoped, tag = 'scoped memory for tpu_custom_call.1']
    #allocation9 [shape = 'u8[16384]{0}', space=vmem, size = 0x4000, scoped, tag = 'input window, operand 3, single buffered']
    #allocation10 [shape = 'u8[1024]{0}', space=vmem, size = 0x400, scoped, tag = 'output window, operand 0, single buffered']
    %14 = vsyncpa [#allocation5], 0
    %15 = vsyncpa [#allocation8], 0
    %16 = vsyncpa [#allocation6], 0
    // Predicated region
    $region2: #{tpu_custom_call.1} parent=1 // pred_check
      _
    $region3: #{tpu_custom_call.1} parent=1 // pred_check_branch
      %18 = sbr.rel (0) target = $region5
    $region4: #{tpu_custom_call.1} parent=1 // pred_region
      %s20 = ssub.s32 256, 256
      %21 = vsyncadd [#allocation5], %s20
      %s22 = sshll.u32 [#allocation4], 4
      %s23 = int_to_ptr.vmem [resolvable:$true] %s22
      %28 = dma.hbm_to_vmem [thread:$0]  %s0, 256, %s23, [#allocation5], 128, 128, 8
    $region5: #{tpu_custom_call.1} parent=1 // pred_fallthru
      _
    // Predicated region
    $region6: #{tpu_custom_call.1} parent=1 // pred_check
      _
    $region7: #{tpu_custom_call.1} parent=1 // pred_check_branch
      %30 = sbr.rel (0) target = $region9
    $region8: #{tpu_custom_call.1} parent=1 // pred_region
      %s32 = ssub.s32 256, 256
      %33 = vsyncadd [#allocation8], %s32
      %s34 = sshll.u32 [#allocation7], 4
      %s35 = int_to_ptr.vmem [resolvable:$true] %s34
      %40 = dma.hbm_to_vmem [thread:$0]  %s1, 256, %s35, [#allocation8], 128, 128, 8
    $region9: #{tpu_custom_call.1} parent=1 // pred_fallthru
      _
    // Predicated region
    $region10: #{tpu_custom_call.1} parent=1 // pred_check
      _
    $region11: #{tpu_custom_call.1} parent=1 // pred_check_branch
      %42 = sbr.rel (0) target = $region13
    $region12: #{tpu_custom_call.1} parent=1 // pred_region
      _
    $region13: #{tpu_custom_call.1} parent=1 // pred_fallthru
      _
    // Predicated region
    $region14: #{tpu_custom_call.1} parent=1 // pred_check
      _
    $region15: #{tpu_custom_call.1} parent=1 // pred_check_branch
      %44 = sbr.rel (0) target = $region17
    $region16: #{tpu_custom_call.1} parent=1 // pred_region
      %s46 = ssub.s32 512, 512
      %47 = vsyncadd [#allocation8], %s46
      %s48 = sshll.u32 [#allocation9], 4
      %s49 = int_to_ptr.vmem [resolvable:$true] %s48
      %54 = dma.hbm_to_vmem [thread:$0]  %s3, 512, %s49, [#allocation8], 128, 128, 8
    $region17: #{tpu_custom_call.1} parent=1 // pred_fallthru
      _
    // Predicated region
    $region18: #{tpu_custom_call.1} parent=1 // pred_check
      _
    $region19: #{tpu_custom_call.1} parent=1 // pred_check_branch
      %56 = sbr.rel (0) target = $region21
    $region20: #{tpu_custom_call.1} parent=1 // pred_region
      _
    $region21: #{tpu_custom_call.1} parent=1 // pred_fallthru
      _
    // Predicated region
    $region22: #{tpu_custom_call.1} parent=1 // pred_check
      _
    $region23: #{tpu_custom_call.1} parent=1 // pred_check_branch
      %58 = sbr.rel (0) target = $region25
    $region24: #{tpu_custom_call.1} parent=1 // pred_region
      _
    $region25: #{tpu_custom_call.1} parent=1 // pred_fallthru
      _
    // Predicated region
    $region26: #{tpu_custom_call.1} parent=1 // pred_check
      _
    $region27: #{tpu_custom_call.1} parent=1 // pred_check_branch
      %60 = sbr.rel (0) target = $region29
    $region28: #{tpu_custom_call.1} parent=1 // pred_region
      _
    $region29: #{tpu_custom_call.1} parent=1 // pred_fallthru
      _
    // Predicated region
    $region30: #{tpu_custom_call.1} parent=1 // pred_check
      _
    $region31: #{tpu_custom_call.1} parent=1 // pred_check_branch
      %62 = sbr.rel (0) target = $region33
    $region32: #{tpu_custom_call.1} parent=1 // pred_region
      _
    $region33: #{tpu_custom_call.1} parent=1 // pred_fallthru
      _
    // Predicated region
    $region34: #{tpu_custom_call.1} parent=1 // pred_check
      _
    $region35: #{tpu_custom_call.1} parent=1 // pred_check_branch
      %64 = sbr.rel (0) target = $region37
    $region36: #{tpu_custom_call.1} parent=1 // pred_region
      _
    $region37: #{tpu_custom_call.1} parent=1 // pred_fallthru
      _
    // Predicated region
    $region38: #{tpu_custom_call.1} parent=1 // pred_check
      _
    $region39: #{tpu_custom_call.1} parent=1 // pred_check_branch
      %66 = sbr.rel (0) target = $region41
    $region40: #{tpu_custom_call.1} parent=1 // pred_region
      %67 = dma.done [#allocation5], 256
    $region41: #{tpu_custom_call.1} parent=1 // pred_fallthru
      _
    // Predicated region
    $region42: #{tpu_custom_call.1} parent=1 // pred_check
      _
    $region43: #{tpu_custom_call.1} parent=1 // pred_check_branch
      %69 = sbr.rel (0) target = $region45
    $region44: #{tpu_custom_call.1} parent=1 // pred_region
      %70 = dma.done [#allocation8], 256
    $region45: #{tpu_custom_call.1} parent=1 // pred_fallthru
      _
    // Predicated region
    $region46: #{tpu_custom_call.1} parent=1 // pred_check
      _
    $region47: #{tpu_custom_call.1} parent=1 // pred_check_branch
      %72 = sbr.rel (0) target = $region49
    $region48: #{tpu_custom_call.1} parent=1 // pred_region
      %73 = dma.done [#allocation8], 512
    $region49: #{tpu_custom_call.1} parent=1 // pred_fallthru
      _
    %p74 = scmp.eq.s32.totalorder 0, 0
    // Predicated region
    $region50: #{tpu_custom_call.1} parent=1 // pred_check
      %p75 = pneg %p74
    $region51: #{tpu_custom_call.1} parent=1 // pred_check_branch
      %77 = sbr.rel (%p75) target = $region53
    $region52: #{tpu_custom_call.1} parent=1 // pred_region
      %vm78 = vcmask 254976
      %79 = vst.msk [vmem:[#allocation2] sm:$0x3] %vm78, 0.0
      %80 = vst.msk [vmem:[#allocation3] sm:$0x3] %vm78, 0.0
    $region53: #{tpu_custom_call.1} parent=1 // pred_fallthru
      _
    %v81 = vld [vmem:[#allocation2] sm:$0x3]
    %v82 = vld [vmem:[#allocation4] sm:$0xff]
    %v83 = vld [vmem:[#allocation4 + $0x8] sm:$0xff]
    %vm84 = vcmask 261120
    %v85 = vsel %vm84, %v82, 0.0
    %v86 = vrot.slane %v85, 4
    %v87 = vadd.f32 %v85, %v86
    %v88 = vrot.slane %v87, 2
    %v89 = vadd.f32 %v87, %v88
    %v90 = vrot.slane %v89, 1
    %v91 = vadd.f32 %v89, %v90
    %v92 = vsel %vm84, %v83, 0.0
    %v93 = vrot.slane %v92, 4
    %v94 = vadd.f32 %v92, %v93
    %v95 = vrot.slane %v94, 2
    %v96 = vadd.f32 %v94, %v95
    %v97 = vrot.slane %v96, 1
    %v98 = vadd.f32 %v96, %v97
    %vm101 = vcmask 1041409
    %v102 = vsel %vm101, %v98, %v91
    %v104 = vadd.f32 %v81, %v102
    %vm105 = vcmask 254976
    %106 = vst.msk [vmem:[#allocation2] sm:$0x3] %vm105, %v104
    %v107 = vld [vmem:[#allocation3] sm:$0x3]
    %v108 = vld [vmem:[#allocation7] sm:$0xff]
    %v109 = vld [vmem:[#allocation7 + $0x8] sm:$0xff]
    %v110 = vsel %vm84, %v108, 0.0
    %v111 = vrot.slane %v110, 4
    %v112 = vadd.f32 %v110, %v111
    %v113 = vrot.slane %v112, 2
    %v114 = vadd.f32 %v112, %v113
    %v115 = vrot.slane %v114, 1
    %v116 = vadd.f32 %v114, %v115
    %v117 = vsel %vm84, %v109, 0.0
    %v118 = vrot.slane %v117, 4
    %v119 = vadd.f32 %v117, %v118
    %v120 = vrot.slane %v119, 2
    %v121 = vadd.f32 %v119, %v120
    %v122 = vrot.slane %v121, 1
    %v123 = vadd.f32 %v121, %v122
    %v126 = vsel %vm101, %v123, %v116
    %v128 = vadd.f32 %v107, %v126
    %129 = vst.msk [vmem:[#allocation3] sm:$0x3] %vm105, %v128
    // Predicated region
    $region54: #{tpu_custom_call.1} parent=1 // pred_check
      %p130 = pneg %p74
    $region55: #{tpu_custom_call.1} parent=1 // pred_check_branch
      %132 = sbr.rel (%p130) target = $region57
    $region56: #{tpu_custom_call.1} parent=1 // pred_region
      %v133 = vld [vmem:[#allocation2] sm:$0x3]
      %v134 = vmul.f32 %v133, 0.125
      %v135 = vld [vmem:[#allocation3] sm:$0x3]
      %v136 = vmul.f32 %v135, 0.125
      %v137 = vld [vmem:[%s2] sm:$0xff]
      %v138 = vld [vmem:[%s2 + $0x8] sm:$0xff]
      %v139 = vld [vmem:[%s2 + $0x10] sm:$0xff]
      %v140 = vld [vmem:[%s2 + $0x18] sm:$0xff]
      %v141 = vld [vmem:[#allocation9] sm:$0xff]
      %v142 = vld [vmem:[#allocation9 + $0x8] sm:$0xff]
      %v143 = vld [vmem:[#allocation9 + $0x10] sm:$0xff]
      %v144 = vld [vmem:[#allocation9 + $0x18] sm:$0xff]
      %v146 = vsel %vm84, %v136, 0
      %148 = vmatprep.subr.mxu0 0.0
      %149 = vmatpush1.msra.mxu0 %v141
      %150 = vmatprep.subr.mxu0 0.0
      %151 = vmatpush1.msra.mxu0 %v142
      %152 = vmatprep.subr.mxu0 0.0
      %153 = vmatpush1.msra.mxu0 %v143
      %154 = vmatprep.subr.mxu0 0.0
      %155 = vmatpush1.msra.mxu0 %v144
      %156 = vmatprep.subr.mxu0 0.0
      %157 = vmatpush1.msra.mxu0 0.0
      %158 = vmatprep.subr.mxu0 0.0
      %159 = vmatpush1.msra.mxu0 0.0
      %160 = vmatprep.subr.mxu0 0.0
      %161 = vmatpush1.msra.mxu0 0.0
      %162 = vmatprep.subr.mxu0 0.0
      %163 = vmatpush1.msra.mxu0 0.0
      %164 = vmatprep.subr.mxu0 0.0
      %165 = vmatpush1.msra.mxu0 0.0
      %166 = vmatprep.subr.mxu0 0.0
      %167 = vmatpush1.msra.mxu0 0.0
      %168 = vmatprep.subr.mxu0 0.0
      %169 = vmatpush1.msra.mxu0 0.0
      %170 = vmatprep.subr.mxu0 0.0
      %171 = vmatpush1.msra.mxu0 0.0
      %172 = vmatprep.subr.mxu0 0.0
      %173 = vmatpush1.msra.mxu0 0.0
      %174 = vmatprep.subr.mxu0 0.0
      %175 = vmatpush1.msra.mxu0 0.0
      %176 = vmatprep.subr.mxu0 0.0
      %177 = vmatpush1.msra.mxu0 0.0
      %178 = vmatprep.subr.mxu0 0.0
      %179 = vmatpush1.msra.mxu0 0.0
      %180 = vmatprep.subr.mxu0 0.0
      %181 = vmatpush1.msra.mxu0 0.0
      %182 = vmatprep.subr.mxu0 0.0
      %183 = vmatpush1.msra.mxu0 0.0
      %184 = vmatprep.subr.mxu0 0.0
      %185 = vmatpush1.msra.mxu0 0.0
      %186 = vmatprep.subr.mxu0 0.0
      %187 = vmatpush1.msra.mxu0 0.0
      %188 = vmatprep.subr.mxu0 0.0
      %189 = vmatpush1.msra.mxu0 0.0
      %190 = vmatprep.subr.mxu0 0.0
      %191 = vmatpush1.msra.mxu0 0.0
      %192 = vmatprep.subr.mxu0 0.0
      %193 = vmatpush1.msra.mxu0 0.0
      %194 = vmatprep.subr.mxu0 0.0
      %195 = vmatpush1.msra.mxu0 0.0
      %196 = vmatprep.subr.mxu0 0.0
      %197 = vmatpush1.msra.mxu0 0.0
      %198 = vmatprep.subr.mxu0 0.0
      %199 = vmatpush1.msra.mxu0 0.0
      %200 = vmatprep.subr.mxu0 0.0
      %201 = vmatpush1.msra.mxu0 0.0
      %202 = vmatprep.subr.mxu0 0.0
      %203 = vmatpush1.msra.mxu0 0.0
      %204 = vmatprep.subr.mxu0 0.0
      %205 = vmatpush1.msra.mxu0 0.0
      %206 = vmatprep.subr.mxu0 0.0
      %207 = vmatpush1.msra.mxu0 0.0
      %208 = vmatprep.subr.mxu0 0.0
      %209 = vmatpush1.msra.mxu0 0.0
      %210 = vmatprep.subr.mxu0 0.0
      %211 = vmatpush1.msra.mxu0 0.0
      %212 = vmatprep.mubr.f32.mxu0 0.0
      %213 = vmatmul.mubr.f32.gmra.mrb[0].mxu0 %v146
      %v214 = vpop.f32.mrb[0].mxu0
      %v215 = vadd.f32 0.0, %v214
      %v216 = vpop.f32.mrb[0].mxu0
      %217 = vdwg.mxu0
      %v219 = vsel %vm84, %v134, 0
      %221 = vmatprep.subr.mxu0 0.0
      %222 = vmatpush1.msra.mxu0 %v137
      %223 = vmatprep.subr.mxu0 0.0
      %224 = vmatpush1.msra.mxu0 %v138
      %225 = vmatprep.subr.mxu0 0.0
      %226 = vmatpush1.msra.mxu0 %v139
      %227 = vmatprep.subr.mxu0 0.0
      %228 = vmatpush1.msra.mxu0 %v140
      %229 = vmatprep.subr.mxu0 0.0
      %230 = vmatpush1.msra.mxu0 0.0
      %231 = vmatprep.subr.mxu0 0.0
      %232 = vmatpush1.msra.mxu0 0.0
      %233 = vmatprep.subr.mxu0 0.0
      %234 = vmatpush1.msra.mxu0 0.0
      %235 = vmatprep.subr.mxu0 0.0
      %236 = vmatpush1.msra.mxu0 0.0
      %237 = vmatprep.subr.mxu0 0.0
      %238 = vmatpush1.msra.mxu0 0.0
      %239 = vmatprep.subr.mxu0 0.0
      %240 = vmatpush1.msra.mxu0 0.0
      %241 = vmatprep.subr.mxu0 0.0
      %242 = vmatpush1.msra.mxu0 0.0
      %243 = vmatprep.subr.mxu0 0.0
      %244 = vmatpush1.msra.mxu0 0.0
      %245 = vmatprep.subr.mxu0 0.0
      %246 = vmatpush1.msra.mxu0 0.0
      %247 = vmatprep.subr.mxu0 0.0
      %248 = vmatpush1.msra.mxu0 0.0
      %249 = vmatprep.subr.mxu0 0.0
      %250 = vmatpush1.msra.mxu0 0.0
      %251 = vmatprep.subr.mxu0 0.0
      %252 = vmatpush1.msra.mxu0 0.0
      %253 = vmatprep.subr.mxu0 0.0
      %254 = vmatpush1.msra.mxu0 0.0
      %255 = vmatprep.subr.mxu0 0.0
      %256 = vmatpush1.msra.mxu0 0.0
      %257 = vmatprep.subr.mxu0 0.0
      %258 = vmatpush1.msra.mxu0 0.0
      %259 = vmatprep.subr.mxu0 0.0
      %260 = vmatpush1.msra.mxu0 0.0
      %261 = vmatprep.subr.mxu0 0.0
      %262 = vmatpush1.msra.mxu0 0.0
      %263 = vmatprep.subr.mxu0 0.0
      %264 = vmatpush1.msra.mxu0 0.0
      %265 = vmatprep.subr.mxu0 0.0
      %266 = vmatpush1.msra.mxu0 0.0
      %267 = vmatprep.subr.mxu0 0.0
      %268 = vmatpush1.msra.mxu0 0.0
      %269 = vmatprep.subr.mxu0 0.0
      %270 = vmatpush1.msra.mxu0 0.0
      %271 = vmatprep.subr.mxu0 0.0
      %272 = vmatpush1.msra.mxu0 0.0
      %273 = vmatprep.subr.mxu0 0.0
      %274 = vmatpush1.msra.mxu0 0.0
      %275 = vmatprep.subr.mxu0 0.0
      %276 = vmatpush1.msra.mxu0 0.0
      %277 = vmatprep.subr.mxu0 0.0
      %278 = vmatpush1.msra.mxu0 0.0
      %279 = vmatprep.subr.mxu0 0.0
      %280 = vmatpush1.msra.mxu0 0.0
      %281 = vmatprep.subr.mxu0 0.0
      %282 = vmatpush1.msra.mxu0 0.0
      %283 = vmatprep.subr.mxu0 0.0
      %284 = vmatpush1.msra.mxu0 0.0
      %285 = vmatprep.mubr.f32.mxu0 0.0
      %286 = vmatmul.mubr.f32.gmra.mrb[0].mxu0 %v219
      %v287 = vpop.f32.mrb[0].mxu0
      %v288 = vadd.f32 %v215, %v287
      %v289 = vpop.f32.mrb[0].mxu0
      %290 = vdwg.mxu0
      %v291 = vld [vmem:[%s4] sm:$0x1]
      %v293 = vlaneseq
      %v294 = vshrl.u32 %v293, 7
      %v295 = vsub.s32 0, %v294
      %v296 = vrot.slane %v291, %v295
      %v298 = vadd.f32 %v288, %v296
      %v299 = vsel %vm105, %v298, 0.0
      %300 = vadd.xlane.f32.xlu0 %v299
      %v301 = vpop.xlane.xlu0 %300
      %v302 = vrcp.pop 32.0
      %v303 = vmul.f32 %v301, %v302
      %v304 = vsub.f32 %v298, %v303
      %v305 = vmul.f32 %v304, %v304
      %v306 = vsel %vm105, %v305, 0.0
      %307 = vadd.xlane.f32.xlu0 %v306
      %v308 = vpop.xlane.xlu0 %307
      %v309 = vmul.f32 %v308, %v302
      %v310 = vadd.f32 %v309, 1e-05
      %v311 = vrsqrt.pop %v310
      %v312 = vmul.f32 %v304, %v311
      %v313 = vld [vmem:[%s5] sm:$0x1]
      %v315 = vlaneseq
      %v316 = vshrl.u32 %v315, 7
      %v317 = vsub.s32 0, %v316
      %v318 = vrot.slane %v313, %v317
      %v320 = vmul.f32 %v312, %v318
      %v321 = vld [vmem:[%s6] sm:$0x1]
      %v323 = vlaneseq
      %v324 = vshrl.u32 %v323, 7
      %v325 = vsub.s32 0, %v324
      %v326 = vrot.slane %v321, %v325
      %v328 = vadd.f32 %v320, %v326
      %v329 = vmax.f32 %v328, 0.0
      %v330 = vld [vmem:[%s7] sm:$0xff]
      %v331 = vld [vmem:[%s7 + $0x8] sm:$0xff]
      %v332 = vld [vmem:[%s7 + $0x10] sm:$0xff]
      %v333 = vld [vmem:[%s7 + $0x18] sm:$0xff]
      %v334 = vld [vmem:[%s8] sm:$0x1]
      %v336 = vlaneseq
      %v337 = vshrl.u32 %v336, 7
      %v338 = vsub.s32 0, %v337
      %v339 = vrot.slane %v334, %v338
      %v342 = vsel %vm84, %v329, 0
      %344 = vmatprep.subr.mxu0 0.0
      %345 = vmatpush1.msra.mxu0 %v330
      %346 = vmatprep.subr.mxu0 0.0
      %347 = vmatpush1.msra.mxu0 %v331
      %348 = vmatprep.subr.mxu0 0.0
      %349 = vmatpush1.msra.mxu0 %v332
      %350 = vmatprep.subr.mxu0 0.0
      %351 = vmatpush1.msra.mxu0 %v333
      %352 = vmatprep.subr.mxu0 0.0
      %353 = vmatpush1.msra.mxu0 0.0
      %354 = vmatprep.subr.mxu0 0.0
      %355 = vmatpush1.msra.mxu0 0.0
      %356 = vmatprep.subr.mxu0 0.0
      %357 = vmatpush1.msra.mxu0 0.0
      %358 = vmatprep.subr.mxu0 0.0
      %359 = vmatpush1.msra.mxu0 0.0
      %360 = vmatprep.subr.mxu0 0.0
      %361 = vmatpush1.msra.mxu0 0.0
      %362 = vmatprep.subr.mxu0 0.0
      %363 = vmatpush1.msra.mxu0 0.0
      %364 = vmatprep.subr.mxu0 0.0
      %365 = vmatpush1.msra.mxu0 0.0
      %366 = vmatprep.subr.mxu0 0.0
      %367 = vmatpush1.msra.mxu0 0.0
      %368 = vmatprep.subr.mxu0 0.0
      %369 = vmatpush1.msra.mxu0 0.0
      %370 = vmatprep.subr.mxu0 0.0
      %371 = vmatpush1.msra.mxu0 0.0
      %372 = vmatprep.subr.mxu0 0.0
      %373 = vmatpush1.msra.mxu0 0.0
      %374 = vmatprep.subr.mxu0 0.0
      %375 = vmatpush1.msra.mxu0 0.0
      %376 = vmatprep.subr.mxu0 0.0
      %377 = vmatpush1.msra.mxu0 0.0
      %378 = vmatprep.subr.mxu0 0.0
      %379 = vmatpush1.msra.mxu0 0.0
      %380 = vmatprep.subr.mxu0 0.0
      %381 = vmatpush1.msra.mxu0 0.0
      %382 = vmatprep.subr.mxu0 0.0
      %383 = vmatpush1.msra.mxu0 0.0
      %384 = vmatprep.subr.mxu0 0.0
      %385 = vmatpush1.msra.mxu0 0.0
      %386 = vmatprep.subr.mxu0 0.0
      %387 = vmatpush1.msra.mxu0 0.0
      %388 = vmatprep.subr.mxu0 0.0
      %389 = vmatpush1.msra.mxu0 0.0
      %390 = vmatprep.subr.mxu0 0.0
      %391 = vmatpush1.msra.mxu0 0.0
      %392 = vmatprep.subr.mxu0 0.0
      %393 = vmatpush1.msra.mxu0 0.0
      %394 = vmatprep.subr.mxu0 0.0
      %395 = vmatpush1.msra.mxu0 0.0
      %396 = vmatprep.subr.mxu0 0.0
      %397 = vmatpush1.msra.mxu0 0.0
      %398 = vmatprep.subr.mxu0 0.0
      %399 = vmatpush1.msra.mxu0 0.0
      %400 = vmatprep.subr.mxu0 0.0
      %401 = vmatpush1.msra.mxu0 0.0
      %402 = vmatprep.subr.mxu0 0.0
      %403 = vmatpush1.msra.mxu0 0.0
      %404 = vmatprep.subr.mxu0 0.0
      %405 = vmatpush1.msra.mxu0 0.0
      %406 = vmatprep.subr.mxu0 0.0
      %407 = vmatpush1.msra.mxu0 0.0
      %408 = vmatprep.mubr.f32.mxu0 0.0
      %409 = vmatmul.mubr.f32.gmra.mrb[0].mxu0 %v342
      %v410 = vpop.f32.mrb[0].mxu0
      %v411 = vadd.f32 %v339, %v410
      %v412 = vpop.f32.mrb[0].mxu0
      %413 = vdwg.mxu0
      %vm414 = vcmask 9216
      %415 = vst.msk [vmem:[#allocation10] sm:$0x3] %vm414, %v411
    $region57: #{tpu_custom_call.1} parent=1 // pred_fallthru
      _
    // Predicated region
    $region58: #{tpu_custom_call.1} parent=1 // pred_check
      _
    $region59: #{tpu_custom_call.1} parent=1 // pred_check_branch
      %417 = sbr.rel (0) target = $region61
    $region60: #{tpu_custom_call.1} parent=1 // pred_region
      %s419 = ssub.s32 32, 32
      %420 = vsyncadd [#allocation6], %s419
      %s422 = sshll.u32 [#allocation10], 4
      %s423 = int_to_ptr.vmem [resolvable:$true] %s422
      %425 = dma.vmem_to_hbm [thread:$0]  %s423, 32, %s9, [#allocation6]
    $region61: #{tpu_custom_call.1} parent=1 // pred_fallthru
      _
    // Predicated region
    $region62: #{tpu_custom_call.1} parent=1 // pred_check
      _
    $region63: #{tpu_custom_call.1} parent=1 // pred_check_branch
      %427 = sbr.rel (0) target = $region65
    $region64: #{tpu_custom_call.1} parent=1 // pred_region
      %428 = dma.done [#allocation6], 32
    $region65: #{tpu_custom_call.1} parent=1 // pred_fallthru
      _
    %429 = vsyncpa [#allocation5], 1
    %430 = vsyncpa [#allocation8], 1
    %431 = vsyncpa [#allocation6], 1

</llo_original>
